<compile_context>
chip_gen: v5e
topology: v5e:2x2
jax: 0.10.0
libtpu: 0.0.40
codegen_flags: <defaults>
</compile_context>

<pallas_src>
from functools import partial

import numpy as np
import jax
import jax.numpy as jnp
from jax.experimental import pallas as pl
from jax.experimental.pallas import tpu as pltpu

DPAD = 128      # lane-dense padded feature width
NROUND = 128    # node-count padding granule (MXU contraction dim of adj @ x)


def _round_up(v, m):
    return -(-v // m) * m


# ---------------------------------------------------------------------------
# Fused encoder kernel: unrolls all layers, adj / x / weights stay VMEM-resident.
# ---------------------------------------------------------------------------
def encoder_kernel(layer_meta, adj_ref, x_ref, w1s_ref, b1s_ref,
                   w2s_ref, b2s_ref, wres_ref, o_ref):
    """layer_meta: static tuple of (proj_idx, alpha1, alpha2) per layer.

    Matmul inputs are bf16 (fast MXU path); accumulation is f32.
    """
    adj = adj_ref[...]                               # (N_pad, N_pad) bf16, exact counts
    x = x_ref[...]                                   # (N_pad, DPAD)  bf16
    x_f32 = x.astype(jnp.float32)
    for l, (pidx, a1, a2) in enumerate(layer_meta):  # static Python unroll
        # GINConv(nn=Identity, eps=0): o_i = x_i + sum_{j in N(i)} x_j  ==  adj @ x
        agg = jnp.dot(adj, x, preferred_element_type=jnp.float32)
        # Linear1 (+ folded BatchNorm1) + PReLU
        h = jnp.dot(agg.astype(jnp.bfloat16), w1s_ref[l],
                    preferred_element_type=jnp.float32) + b1s_ref[l]
        h = jnp.where(h > 0, h, a1 * h)
        # Linear2 (+ folded BatchNorm2) + PReLU
        h = jnp.dot(h.astype(jnp.bfloat16), w2s_ref[l],
                    preferred_element_type=jnp.float32) + b2s_ref[l]
        h = jnp.where(h > 0, h, a2 * h)
        # residual: identity add (din == dout) or bias-free projection
        if pidx >= 0:
            res = jnp.dot(x, wres_ref[pidx], preferred_element_type=jnp.float32)
        else:
            res = x_f32
        x_f32 = h + res
        x = x_f32.astype(jnp.bfloat16)
    o_ref[...] = x_f32


# ---------------------------------------------------------------------------
# Host-side parameter preparation (runs ONCE): BN fold + zero-pad + stack.
# ---------------------------------------------------------------------------
def _pad2(a, r, c, dtype):
    return jnp.zeros((r, c), dtype).at[:a.shape[0], :a.shape[1]].set(a.astype(dtype))


def fold_and_pad(layers, dpad=DPAD):
    w1s, b1s, w2s, b2s, wres_list, alphas, proj_index = [], [], [], [], [], [], []
    for p in layers:
        # fold BatchNorm(eval) affine into the preceding Linear
        w1f = p["w1"] * p["s1"]
        b1f = p["b1"] * p["s1"] + p["t1"]
        w2f = p["w2"] * p["s2"]
        b2f = p["b2"] * p["s2"] + p["t2"]
        w1s.append(_pad2(w1f, dpad, dpad, jnp.bfloat16))
        b1s.append(_pad2(b1f, 1, dpad, jnp.float32))
        w2s.append(_pad2(w2f, dpad, dpad, jnp.bfloat16))
        b2s.append(_pad2(b2f, 1, dpad, jnp.float32))
        if p["wres"] is None:                        # nn.Identity residual
            proj_index.append(-1)
        else:                                        # nn.Linear(..., bias=False)
            proj_index.append(len(wres_list))
            wres_list.append(_pad2(p["wres"], dpad, dpad, jnp.bfloat16))
        alphas.append((float(p["a1"][0]), float(p["a2"][0])))
    if not wres_list:
        wres_list.append(jnp.zeros((dpad, dpad), jnp.bfloat16))
    packed = dict(
        w1s=jnp.stack(w1s), b1s=jnp.stack(b1s),
        w2s=jnp.stack(w2s), b2s=jnp.stack(b2s),
        wres=jnp.stack(wres_list),
    )
    dout = layers[-1]["w2"].shape[1]
    return packed, proj_index, alphas, dout


def build_adj(edge_index, n):
    # dense in-adjacency: adj[dst, src] += 1; plus (1+eps)*I self term (eps=0)
    src, dst = edge_index[0], edge_index[1]
    adj = jnp.zeros((n, n), jnp.float32).at[dst, src].add(1.0)
    return adj + jnp.eye(n, dtype=jnp.float32)


# ---------------------------------------------------------------------------
# Forward factory: packing stays hoisted; gather + adj build + pad + pallas_call
# are jitted together.
# ---------------------------------------------------------------------------
def make_maegin_encoder(packed, proj_index, alphas, node_dim, dout, n, dpad=DPAD):
    n_pad = max(_round_up(n, NROUND), NROUND)
    layer_meta = tuple((proj_index[l], alphas[l][0], alphas[l][1])
                       for l in range(len(proj_index)))
    kernel = partial(encoder_kernel, layer_meta)

    # VMEM budget: resident adj + x(bf16) + out(f32) + stacked weights, 2x margin,
    # clamped to [16 MiB, 48 MiB] so it stays valid on v7x's 64 MiB physical VMEM.
    weight_bytes = (packed["w1s"].size + packed["w2s"].size + packed["wres"].size) * 2 \
                 + (packed["b1s"].size + packed["b2s"].size) * 4
    resident = n_pad * n_pad * 2 + n_pad * dpad * (2 + 4) + weight_bytes
    vmem_limit = int(min(max(2 * resident + (4 << 20), 16 << 20), 48 << 20))

    vmem = pl.BlockSpec(memory_space=pltpu.MemorySpace.VMEM)
    fused = pl.pallas_call(
        kernel,
        out_shape=jax.ShapeDtypeStruct((n_pad, dpad), jnp.float32),
        in_specs=[vmem] * 7,
        out_specs=vmem,
        compiler_params=pltpu.CompilerParams(vmem_limit_bytes=vmem_limit),
    )

    @jax.jit
    def forward(node_ids, edge_index, embedding, packed):
        # Embedding lookup + squeeze(1); F.dropout(training=False) == identity.
        x = jnp.take(embedding, node_ids[:, 0], axis=0)          # (N, node_dim)
        adj = build_adj(edge_index, n)                           # (N, N), exact small ints
        x_pad = jnp.zeros((n_pad, dpad), jnp.bfloat16) \
                   .at[:n, :node_dim].set(x.astype(jnp.bfloat16))
        adj_pad = jnp.zeros((n_pad, n_pad), jnp.bfloat16) \
                     .at[:n, :n].set(adj.astype(jnp.bfloat16))   # bf16 exact (counts)
        out_pad = fused(adj_pad, x_pad, packed["w1s"], packed["b1s"],
                        packed["w2s"], packed["b2s"], packed["wres"])
        return out_pad[:n, :dout]

    return forward


# ---------------------------------------------------------------------------
# Parameter init replicating MAEGINEncoder.__init__ dimension schedule.
# ---------------------------------------------------------------------------
def init_params(key, node_dict_size, node_dim, hidden_dim, layer_number=3):
    dims = np.linspace(node_dim, hidden_dim, 1 + layer_number + 1 + 1,
                       endpoint=True, dtype=int)
    layer_dims = [(int(dims[0]), int(dims[0]), int(dims[1]))]
    for i in range(1, 1 + layer_number):
        layer_dims.append((int(dims[i]), int(dims[i + 1]), int(dims[i + 1])))
    layer_dims.append((int(dims[1 + layer_number]),
                       int(dims[1 + layer_number]),
                       int(dims[2 + layer_number])))

    keys = jax.random.split(key, 1 + len(layer_dims))
    embedding = 0.5 * jax.random.normal(keys[0], (node_dict_size, node_dim), jnp.float32)

    def bn_fold(k, d):
        k1, k2, k3, k4 = jax.random.split(k, 4)
        gamma = 1.0 + 0.1 * jax.random.normal(k1, (d,), jnp.float32)
        beta = 0.1 * jax.random.normal(k2, (d,), jnp.float32)
        rmean = 0.1 * jax.random.normal(k3, (d,), jnp.float32)
        rvar = jax.random.uniform(k4, (d,), jnp.float32, 0.5, 1.5)
        scale = gamma / jnp.sqrt(rvar + 1e-5)
        shift = beta - rmean * scale
        return scale.reshape(1, d), shift.reshape(1, d)

    layers = []
    for (din, hid, dout), k in zip(layer_dims, keys[1:]):
        ks = jax.random.split(k, 8)
        w1 = jax.random.normal(ks[0], (din, hid), jnp.float32) / np.sqrt(din)
        b1 = (0.01 * jax.random.normal(ks[1], (hid,), jnp.float32)).reshape(1, hid)
        s1, t1 = bn_fold(ks[2], hid)
        w2 = jax.random.normal(ks[3], (hid, dout), jnp.float32) / np.sqrt(hid)
        b2 = (0.01 * jax.random.normal(ks[4], (dout,), jnp.float32)).reshape(1, dout)
        s2, t2 = bn_fold(ks[5], dout)
        if din == dout:
            wres = None                                     # nn.Identity residual
        else:
            wres = jax.random.normal(ks[6], (din, dout), jnp.float32) / np.sqrt(din)
        a1 = jnp.array([0.25], jnp.float32)                 # PReLU default init
        a2 = jnp.array([0.25], jnp.float32)
        layers.append(dict(w1=w1, b1=b1, s1=s1, t1=t1,
                           w2=w2, b2=b2, s2=s2, t2=t2,
                           wres=wres, a1=a1, a2=a2))
    return embedding, layers


# ---------------------------------------------------------------------------
# Pure-JAX references for correctness checking.
# ---------------------------------------------------------------------------
def _folded(p):
    w1f = p["w1"] * p["s1"]
    b1f = p["b1"] * p["s1"] + p["t1"]
    w2f = p["w2"] * p["s2"]
    b2f = p["b2"] * p["s2"] + p["t2"]
    return w1f, b1f, w2f, b2f


def encoder_ref_f32(node_ids, edge_index, embedding, layers):
    n = node_ids.shape[0]
    x = jnp.take(embedding, node_ids[:, 0], axis=0)
    adj = build_adj(edge_index, n)
    for p in layers:
        w1f, b1f, w2f, b2f = _folded(p)
        agg = adj @ x
        h = agg @ w1f + b1f
        h = jnp.where(h > 0, h, p["a1"][0] * h)
        h = h @ w2f + b2f
        h = jnp.where(h > 0, h, p["a2"][0] * h)
        res = x if p["wres"] is None else x @ p["wres"]
        x = h + res
    return x


def encoder_ref_mixed(node_ids, edge_index, embedding, layers):
    # Mirrors the kernel's arithmetic: bf16 matmul inputs, f32 accumulation.
    n = node_ids.shape[0]
    adj = build_adj(edge_index, n).astype(jnp.bfloat16)
    x = jnp.take(embedding, node_ids[:, 0], axis=0).astype(jnp.bfloat16)
    x_f32 = x.astype(jnp.float32)
    for p in layers:
        w1f, b1f, w2f, b2f = _folded(p)
        agg = jnp.dot(adj, x, preferred_element_type=jnp.float32)
        h = jnp.dot(agg.astype(jnp.bfloat16), w1f.astype(jnp.bfloat16),
                    preferred_element_type=jnp.float32) + b1f
        h = jnp.where(h > 0, h, p["a1"][0] * h)
        h = jnp.dot(h.astype(jnp.bfloat16), w2f.astype(jnp.bfloat16),
                    preferred_element_type=jnp.float32) + b2f
        h = jnp.where(h > 0, h, p["a2"][0] * h)
        if p["wres"] is None:
            res = x_f32
        else:
            res = jnp.dot(x, p["wres"].astype(jnp.bfloat16),
                          preferred_element_type=jnp.float32)
        x_f32 = h + res
        x = x_f32.astype(jnp.bfloat16)
    return x_f32


if __name__ == "__main__":
    node_dict_size = 50
    node_dim = 16
    hidden_dim = 32
    dropout_rate = 0.1   # inference mode -> identity
    layer_number = 3
    N, E = 16, 40

    key = jax.random.PRNGKey(0)
    k_param, k_ids, k_edges = jax.random.split(key, 3)

    embedding, layers = init_params(k_param, node_dict_size, node_dim,
                                    hidden_dim, layer_number)
    node_ids = jax.random.randint(k_ids, (N, 1), 0, node_dict_size, dtype=jnp.int32)
    edge_index = jax.random.randint(k_edges, (2, E), 0, N, dtype=jnp.int32)

    # One-time host-side packing (hoisted out of the forward path).
    packed, proj_index, alphas, dout = fold_and_pad(layers)
    forward = make_maegin_encoder(packed, proj_index, alphas, node_dim, dout, N)

    out = forward(node_ids, edge_index, embedding, packed)
    out = jax.block_until_ready(out)
    assert out.shape == (N, hidden_dim)

    # Tight check vs a reference that mirrors the kernel's bf16/f32 arithmetic.
    ref_mixed = encoder_ref_mixed(node_ids, edge_index, embedding, layers)
    err_mixed = float(jnp.max(jnp.abs(out - ref_mixed)))
    assert jnp.allclose(out, ref_mixed, atol=1e-2, rtol=1e-2), err_mixed

    # Sanity check vs the pure-f32 module semantics (bf16 cast costs ~0.2%/dot).
    ref_f32 = encoder_ref_f32(node_ids, edge_index, embedding, layers)
    rel = float(jnp.max(jnp.abs(out - ref_f32)) / (jnp.max(jnp.abs(ref_f32)) + 1e-6))
    assert rel < 8e-2, rel

    print("KERNEL_OK")
</pallas_src>

<mosaic_0001>
module attributes {stable_mosaic.version = 11 : i64} {
  func.func @encoder_kernel(%arg0: memref<128x128xbf16, #tpu.memory_space<vmem>>, %arg1: memref<128x128xbf16, #tpu.memory_space<vmem>>, %arg2: memref<5x128x128xbf16, #tpu.memory_space<vmem>>, %arg3: memref<5x1x128xf32, #tpu.memory_space<vmem>>, %arg4: memref<5x128x128xbf16, #tpu.memory_space<vmem>>, %arg5: memref<5x1x128xf32, #tpu.memory_space<vmem>>, %arg6: memref<5x128x128xbf16, #tpu.memory_space<vmem>>, %arg7: memref<128x128xf32, #tpu.memory_space<vmem>>) attributes {dimension_semantics = [], scalar_prefetch = 0 : i64, scratch_operands = 0 : i64, tpu.core_type = #tpu.core_type<tc>} {
    %c0 = arith.constant 0 : index
    %c0_0 = arith.constant 0 : index
    %0 = vector.load %arg0[%c0, %c0_0] : memref<128x128xbf16, #tpu.memory_space<vmem>>, vector<128x128xbf16>
    %c0_1 = arith.constant 0 : index
    %c0_2 = arith.constant 0 : index
    %1 = vector.load %arg1[%c0_1, %c0_2] : memref<128x128xbf16, #tpu.memory_space<vmem>>, vector<128x128xbf16>
    %cst = arith.constant dense<0.000000e+00> : vector<128x128xf32>
    %2 = tpu.matmul %0, %1, %cst {dimension_numbers = #tpu.dot_dimension_numbers<[1], [0], [0], [1], [0, 0, 1, 1], [], []>} : vector<128x128xbf16>, vector<128x128xbf16>, vector<128x128xf32> -> vector<128x128xf32>
    %3 = arith.truncf %2 : vector<128x128xf32> to vector<128x128xbf16>
    %c0_3 = arith.constant 0 : index
    %c0_4 = arith.constant 0 : index
    %c0_5 = arith.constant 0 : index
    %4 = vector.load %arg2[%c0_3, %c0_4, %c0_5] : memref<5x128x128xbf16, #tpu.memory_space<vmem>>, vector<1x128x128xbf16>
    %5 = vector.shape_cast %4 : vector<1x128x128xbf16> to vector<128x128xbf16>
    %cst_6 = arith.constant dense<0.000000e+00> : vector<128x128xf32>
    %6 = tpu.matmul %3, %5, %cst_6 {dimension_numbers = #tpu.dot_dimension_numbers<[1], [0], [0], [1], [0, 0, 1, 1], [], []>} : vector<128x128xbf16>, vector<128x128xbf16>, vector<128x128xf32> -> vector<128x128xf32>
    %c0_7 = arith.constant 0 : index
    %c0_8 = arith.constant 0 : index
    %c0_9 = arith.constant 0 : index
    %7 = vector.load %arg3[%c0_7, %c0_8, %c0_9] : memref<5x1x128xf32, #tpu.memory_space<vmem>>, vector<1x1x128xf32>
    %8 = vector.shape_cast %7 : vector<1x1x128xf32> to vector<1x128xf32>
    %9 = vector.broadcast %8 : vector<1x128xf32> to vector<128x128xf32>
    %10 = arith.addf %6, %9 : vector<128x128xf32>
    %cst_10 = arith.constant 0.000000e+00 : f32
    %11 = vector.broadcast %cst_10 : f32 to vector<128x128xf32>
    %12 = arith.cmpf ogt, %10, %11 : vector<128x128xf32>
    %cst_11 = arith.constant 2.500000e-01 : f32
    %13 = vector.broadcast %cst_11 : f32 to vector<128x128xf32>
    %14 = arith.mulf %13, %10 : vector<128x128xf32>
    %15 = arith.select %12, %10, %14 : vector<128x128xi1>, vector<128x128xf32>
    %16 = arith.truncf %15 : vector<128x128xf32> to vector<128x128xbf16>
    %c0_12 = arith.constant 0 : index
    %c0_13 = arith.constant 0 : index
    %c0_14 = arith.constant 0 : index
    %17 = vector.load %arg4[%c0_12, %c0_13, %c0_14] : memref<5x128x128xbf16, #tpu.memory_space<vmem>>, vector<1x128x128xbf16>
    %18 = vector.shape_cast %17 : vector<1x128x128xbf16> to vector<128x128xbf16>
    %cst_15 = arith.constant dense<0.000000e+00> : vector<128x128xf32>
    %19 = tpu.matmul %16, %18, %cst_15 {dimension_numbers = #tpu.dot_dimension_numbers<[1], [0], [0], [1], [0, 0, 1, 1], [], []>} : vector<128x128xbf16>, vector<128x128xbf16>, vector<128x128xf32> -> vector<128x128xf32>
    %c0_16 = arith.constant 0 : index
    %c0_17 = arith.constant 0 : index
    %c0_18 = arith.constant 0 : index
    %20 = vector.load %arg5[%c0_16, %c0_17, %c0_18] : memref<5x1x128xf32, #tpu.memory_space<vmem>>, vector<1x1x128xf32>
    %21 = vector.shape_cast %20 : vector<1x1x128xf32> to vector<1x128xf32>
    %22 = vector.broadcast %21 : vector<1x128xf32> to vector<128x128xf32>
    %23 = arith.addf %19, %22 : vector<128x128xf32>
    %cst_19 = arith.constant 0.000000e+00 : f32
    %24 = vector.broadcast %cst_19 : f32 to vector<128x128xf32>
    %25 = arith.cmpf ogt, %23, %24 : vector<128x128xf32>
    %cst_20 = arith.constant 2.500000e-01 : f32
    %26 = vector.broadcast %cst_20 : f32 to vector<128x128xf32>
    %27 = arith.mulf %26, %23 : vector<128x128xf32>
    %28 = arith.select %25, %23, %27 : vector<128x128xi1>, vector<128x128xf32>
    %c0_21 = arith.constant 0 : index
    %c0_22 = arith.constant 0 : index
    %c0_23 = arith.constant 0 : index
    %29 = vector.load %arg6[%c0_21, %c0_22, %c0_23] : memref<5x128x128xbf16, #tpu.memory_space<vmem>>, vector<1x128x128xbf16>
    %30 = vector.shape_cast %29 : vector<1x128x128xbf16> to vector<128x128xbf16>
    %cst_24 = arith.constant dense<0.000000e+00> : vector<128x128xf32>
    %31 = tpu.matmul %1, %30, %cst_24 {dimension_numbers = #tpu.dot_dimension_numbers<[1], [0], [0], [1], [0, 0, 1, 1], [], []>} : vector<128x128xbf16>, vector<128x128xbf16>, vector<128x128xf32> -> vector<128x128xf32>
    %32 = arith.addf %28, %31 : vector<128x128xf32>
    %33 = arith.truncf %32 : vector<128x128xf32> to vector<128x128xbf16>
    %cst_25 = arith.constant dense<0.000000e+00> : vector<128x128xf32>
    %34 = tpu.matmul %0, %33, %cst_25 {dimension_numbers = #tpu.dot_dimension_numbers<[1], [0], [0], [1], [0, 0, 1, 1], [], []>} : vector<128x128xbf16>, vector<128x128xbf16>, vector<128x128xf32> -> vector<128x128xf32>
    %35 = arith.truncf %34 : vector<128x128xf32> to vector<128x128xbf16>
    %c1 = arith.constant 1 : index
    %c0_26 = arith.constant 0 : index
    %c0_27 = arith.constant 0 : index
    %36 = vector.load %arg2[%c1, %c0_26, %c0_27] : memref<5x128x128xbf16, #tpu.memory_space<vmem>>, vector<1x128x128xbf16>
    %37 = vector.shape_cast %36 : vector<1x128x128xbf16> to vector<128x128xbf16>
    %cst_28 = arith.constant dense<0.000000e+00> : vector<128x128xf32>
    %38 = tpu.matmul %35, %37, %cst_28 {dimension_numbers = #tpu.dot_dimension_numbers<[1], [0], [0], [1], [0, 0, 1, 1], [], []>} : vector<128x128xbf16>, vector<128x128xbf16>, vector<128x128xf32> -> vector<128x128xf32>
    %c1_29 = arith.constant 1 : index
    %c0_30 = arith.constant 0 : index
    %c0_31 = arith.constant 0 : index
    %39 = vector.load %arg3[%c1_29, %c0_30, %c0_31] : memref<5x1x128xf32, #tpu.memory_space<vmem>>, vector<1x1x128xf32>
    %40 = vector.shape_cast %39 : vector<1x1x128xf32> to vector<1x128xf32>
    %41 = vector.broadcast %40 : vector<1x128xf32> to vector<128x128xf32>
    %42 = arith.addf %38, %41 : vector<128x128xf32>
    %cst_32 = arith.constant 0.000000e+00 : f32
    %43 = vector.broadcast %cst_32 : f32 to vector<128x128xf32>
    %44 = arith.cmpf ogt, %42, %43 : vector<128x128xf32>
    %cst_33 = arith.constant 2.500000e-01 : f32
    %45 = vector.broadcast %cst_33 : f32 to vector<128x128xf32>
    %46 = arith.mulf %45, %42 : vector<128x128xf32>
    %47 = arith.select %44, %42, %46 : vector<128x128xi1>, vector<128x128xf32>
    %48 = arith.truncf %47 : vector<128x128xf32> to vector<128x128xbf16>
    %c1_34 = arith.constant 1 : index
    %c0_35 = arith.constant 0 : index
    %c0_36 = arith.constant 0 : index
    %49 = vector.load %arg4[%c1_34, %c0_35, %c0_36] : memref<5x128x128xbf16, #tpu.memory_space<vmem>>, vector<1x128x128xbf16>
    %50 = vector.shape_cast %49 : vector<1x128x128xbf16> to vector<128x128xbf16>
    %cst_37 = arith.constant dense<0.000000e+00> : vector<128x128xf32>
    %51 = tpu.matmul %48, %50, %cst_37 {dimension_numbers = #tpu.dot_dimension_numbers<[1], [0], [0], [1], [0, 0, 1, 1], [], []>} : vector<128x128xbf16>, vector<128x128xbf16>, vector<128x128xf32> -> vector<128x128xf32>
    %c1_38 = arith.constant 1 : index
    %c0_39 = arith.constant 0 : index
    %c0_40 = arith.constant 0 : index
    %52 = vector.load %arg5[%c1_38, %c0_39, %c0_40] : memref<5x1x128xf32, #tpu.memory_space<vmem>>, vector<1x1x128xf32>
    %53 = vector.shape_cast %52 : vector<1x1x128xf32> to vector<1x128xf32>
    %54 = vector.broadcast %53 : vector<1x128xf32> to vector<128x128xf32>
    %55 = arith.addf %51, %54 : vector<128x128xf32>
    %cst_41 = arith.constant 0.000000e+00 : f32
    %56 = vector.broadcast %cst_41 : f32 to vector<128x128xf32>
    %57 = arith.cmpf ogt, %55, %56 : vector<128x128xf32>
    %cst_42 = arith.constant 2.500000e-01 : f32
    %58 = vector.broadcast %cst_42 : f32 to vector<128x128xf32>
    %59 = arith.mulf %58, %55 : vector<128x128xf32>
    %60 = arith.select %57, %55, %59 : vector<128x128xi1>, vector<128x128xf32>
    %c1_43 = arith.constant 1 : index
    %c0_44 = arith.constant 0 : index
    %c0_45 = arith.constant 0 : index
    %61 = vector.load %arg6[%c1_43, %c0_44, %c0_45] : memref<5x128x128xbf16, #tpu.memory_space<vmem>>, vector<1x128x128xbf16>
    %62 = vector.shape_cast %61 : vector<1x128x128xbf16> to vector<128x128xbf16>
    %cst_46 = arith.constant dense<0.000000e+00> : vector<128x128xf32>
    %63 = tpu.matmul %33, %62, %cst_46 {dimension_numbers = #tpu.dot_dimension_numbers<[1], [0], [0], [1], [0, 0, 1, 1], [], []>} : vector<128x128xbf16>, vector<128x128xbf16>, vector<128x128xf32> -> vector<128x128xf32>
    %64 = arith.addf %60, %63 : vector<128x128xf32>
    %65 = arith.truncf %64 : vector<128x128xf32> to vector<128x128xbf16>
    %cst_47 = arith.constant dense<0.000000e+00> : vector<128x128xf32>
    %66 = tpu.matmul %0, %65, %cst_47 {dimension_numbers = #tpu.dot_dimension_numbers<[1], [0], [0], [1], [0, 0, 1, 1], [], []>} : vector<128x128xbf16>, vector<128x128xbf16>, vector<128x128xf32> -> vector<128x128xf32>
    %67 = arith.truncf %66 : vector<128x128xf32> to vector<128x128xbf16>
    %c2 = arith.constant 2 : index
    %c0_48 = arith.constant 0 : index
    %c0_49 = arith.constant 0 : index
    %68 = vector.load %arg2[%c2, %c0_48, %c0_49] : memref<5x128x128xbf16, #tpu.memory_space<vmem>>, vector<1x128x128xbf16>
    %69 = vector.shape_cast %68 : vector<1x128x128xbf16> to vector<128x128xbf16>
    %cst_50 = arith.constant dense<0.000000e+00> : vector<128x128xf32>
    %70 = tpu.matmul %67, %69, %cst_50 {dimension_numbers = #tpu.dot_dimension_numbers<[1], [0], [0], [1], [0, 0, 1, 1], [], []>} : vector<128x128xbf16>, vector<128x128xbf16>, vector<128x128xf32> -> vector<128x128xf32>
    %c2_51 = arith.constant 2 : index
    %c0_52 = arith.constant 0 : index
    %c0_53 = arith.constant 0 : index
    %71 = vector.load %arg3[%c2_51, %c0_52, %c0_53] : memref<5x1x128xf32, #tpu.memory_space<vmem>>, vector<1x1x128xf32>
    %72 = vector.shape_cast %71 : vector<1x1x128xf32> to vector<1x128xf32>
    %73 = vector.broadcast %72 : vector<1x128xf32> to vector<128x128xf32>
    %74 = arith.addf %70, %73 : vector<128x128xf32>
    %cst_54 = arith.constant 0.000000e+00 : f32
    %75 = vector.broadcast %cst_54 : f32 to vector<128x128xf32>
    %76 = arith.cmpf ogt, %74, %75 : vector<128x128xf32>
    %cst_55 = arith.constant 2.500000e-01 : f32
    %77 = vector.broadcast %cst_55 : f32 to vector<128x128xf32>
    %78 = arith.mulf %77, %74 : vector<128x128xf32>
    %79 = arith.select %76, %74, %78 : vector<128x128xi1>, vector<128x128xf32>
    %80 = arith.truncf %79 : vector<128x128xf32> to vector<128x128xbf16>
    %c2_56 = arith.constant 2 : index
    %c0_57 = arith.constant 0 : index
    %c0_58 = arith.constant 0 : index
    %81 = vector.load %arg4[%c2_56, %c0_57, %c0_58] : memref<5x128x128xbf16, #tpu.memory_space<vmem>>, vector<1x128x128xbf16>
    %82 = vector.shape_cast %81 : vector<1x128x128xbf16> to vector<128x128xbf16>
    %cst_59 = arith.constant dense<0.000000e+00> : vector<128x128xf32>
    %83 = tpu.matmul %80, %82, %cst_59 {dimension_numbers = #tpu.dot_dimension_numbers<[1], [0], [0], [1], [0, 0, 1, 1], [], []>} : vector<128x128xbf16>, vector<128x128xbf16>, vector<128x128xf32> -> vector<128x128xf32>
    %c2_60 = arith.constant 2 : index
    %c0_61 = arith.constant 0 : index
    %c0_62 = arith.constant 0 : index
    %84 = vector.load %arg5[%c2_60, %c0_61, %c0_62] : memref<5x1x128xf32, #tpu.memory_space<vmem>>, vector<1x1x128xf32>
    %85 = vector.shape_cast %84 : vector<1x1x128xf32> to vector<1x128xf32>
    %86 = vector.broadcast %85 : vector<1x128xf32> to vector<128x128xf32>
    %87 = arith.addf %83, %86 : vector<128x128xf32>
    %cst_63 = arith.constant 0.000000e+00 : f32
    %88 = vector.broadcast %cst_63 : f32 to vector<128x128xf32>
    %89 = arith.cmpf ogt, %87, %88 : vector<128x128xf32>
    %cst_64 = arith.constant 2.500000e-01 : f32
    %90 = vector.broadcast %cst_64 : f32 to vector<128x128xf32>
    %91 = arith.mulf %90, %87 : vector<128x128xf32>
    %92 = arith.select %89, %87, %91 : vector<128x128xi1>, vector<128x128xf32>
    %c2_65 = arith.constant 2 : index
    %c0_66 = arith.constant 0 : index
    %c0_67 = arith.constant 0 : index
    %93 = vector.load %arg6[%c2_65, %c0_66, %c0_67] : memref<5x128x128xbf16, #tpu.memory_space<vmem>>, vector<1x128x128xbf16>
    %94 = vector.shape_cast %93 : vector<1x128x128xbf16> to vector<128x128xbf16>
    %cst_68 = arith.constant dense<0.000000e+00> : vector<128x128xf32>
    %95 = tpu.matmul %65, %94, %cst_68 {dimension_numbers = #tpu.dot_dimension_numbers<[1], [0], [0], [1], [0, 0, 1, 1], [], []>} : vector<128x128xbf16>, vector<128x128xbf16>, vector<128x128xf32> -> vector<128x128xf32>
    %96 = arith.addf %92, %95 : vector<128x128xf32>
    %97 = arith.truncf %96 : vector<128x128xf32> to vector<128x128xbf16>
    %cst_69 = arith.constant dense<0.000000e+00> : vector<128x128xf32>
    %98 = tpu.matmul %0, %97, %cst_69 {dimension_numbers = #tpu.dot_dimension_numbers<[1], [0], [0], [1], [0, 0, 1, 1], [], []>} : vector<128x128xbf16>, vector<128x128xbf16>, vector<128x128xf32> -> vector<128x128xf32>
    %99 = arith.truncf %98 : vector<128x128xf32> to vector<128x128xbf16>
    %c3 = arith.constant 3 : index
    %c0_70 = arith.constant 0 : index
    %c0_71 = arith.constant 0 : index
    %100 = vector.load %arg2[%c3, %c0_70, %c0_71] : memref<5x128x128xbf16, #tpu.memory_space<vmem>>, vector<1x128x128xbf16>
    %101 = vector.shape_cast %100 : vector<1x128x128xbf16> to vector<128x128xbf16>
    %cst_72 = arith.constant dense<0.000000e+00> : vector<128x128xf32>
    %102 = tpu.matmul %99, %101, %cst_72 {dimension_numbers = #tpu.dot_dimension_numbers<[1], [0], [0], [1], [0, 0, 1, 1], [], []>} : vector<128x128xbf16>, vector<128x128xbf16>, vector<128x128xf32> -> vector<128x128xf32>
    %c3_73 = arith.constant 3 : index
    %c0_74 = arith.constant 0 : index
    %c0_75 = arith.constant 0 : index
    %103 = vector.load %arg3[%c3_73, %c0_74, %c0_75] : memref<5x1x128xf32, #tpu.memory_space<vmem>>, vector<1x1x128xf32>
    %104 = vector.shape_cast %103 : vector<1x1x128xf32> to vector<1x128xf32>
    %105 = vector.broadcast %104 : vector<1x128xf32> to vector<128x128xf32>
    %106 = arith.addf %102, %105 : vector<128x128xf32>
    %cst_76 = arith.constant 0.000000e+00 : f32
    %107 = vector.broadcast %cst_76 : f32 to vector<128x128xf32>
    %108 = arith.cmpf ogt, %106, %107 : vector<128x128xf32>
    %cst_77 = arith.constant 2.500000e-01 : f32
    %109 = vector.broadcast %cst_77 : f32 to vector<128x128xf32>
    %110 = arith.mulf %109, %106 : vector<128x128xf32>
    %111 = arith.select %108, %106, %110 : vector<128x128xi1>, vector<128x128xf32>
    %112 = arith.truncf %111 : vector<128x128xf32> to vector<128x128xbf16>
    %c3_78 = arith.constant 3 : index
    %c0_79 = arith.constant 0 : index
    %c0_80 = arith.constant 0 : index
    %113 = vector.load %arg4[%c3_78, %c0_79, %c0_80] : memref<5x128x128xbf16, #tpu.memory_space<vmem>>, vector<1x128x128xbf16>
    %114 = vector.shape_cast %113 : vector<1x128x128xbf16> to vector<128x128xbf16>
    %cst_81 = arith.constant dense<0.000000e+00> : vector<128x128xf32>
    %115 = tpu.matmul %112, %114, %cst_81 {dimension_numbers = #tpu.dot_dimension_numbers<[1], [0], [0], [1], [0, 0, 1, 1], [], []>} : vector<128x128xbf16>, vector<128x128xbf16>, vector<128x128xf32> -> vector<128x128xf32>
    %c3_82 = arith.constant 3 : index
    %c0_83 = arith.constant 0 : index
    %c0_84 = arith.constant 0 : index
    %116 = vector.load %arg5[%c3_82, %c0_83, %c0_84] : memref<5x1x128xf32, #tpu.memory_space<vmem>>, vector<1x1x128xf32>
    %117 = vector.shape_cast %116 : vector<1x1x128xf32> to vector<1x128xf32>
    %118 = vector.broadcast %117 : vector<1x128xf32> to vector<128x128xf32>
    %119 = arith.addf %115, %118 : vector<128x128xf32>
    %cst_85 = arith.constant 0.000000e+00 : f32
    %120 = vector.broadcast %cst_85 : f32 to vector<128x128xf32>
    %121 = arith.cmpf ogt, %119, %120 : vector<128x128xf32>
    %cst_86 = arith.constant 2.500000e-01 : f32
    %122 = vector.broadcast %cst_86 : f32 to vector<128x128xf32>
    %123 = arith.mulf %122, %119 : vector<128x128xf32>
    %124 = arith.select %121, %119, %123 : vector<128x128xi1>, vector<128x128xf32>
    %c3_87 = arith.constant 3 : index
    %c0_88 = arith.constant 0 : index
    %c0_89 = arith.constant 0 : index
    %125 = vector.load %arg6[%c3_87, %c0_88, %c0_89] : memref<5x128x128xbf16, #tpu.memory_space<vmem>>, vector<1x128x128xbf16>
    %126 = vector.shape_cast %125 : vector<1x128x128xbf16> to vector<128x128xbf16>
    %cst_90 = arith.constant dense<0.000000e+00> : vector<128x128xf32>
    %127 = tpu.matmul %97, %126, %cst_90 {dimension_numbers = #tpu.dot_dimension_numbers<[1], [0], [0], [1], [0, 0, 1, 1], [], []>} : vector<128x128xbf16>, vector<128x128xbf16>, vector<128x128xf32> -> vector<128x128xf32>
    %128 = arith.addf %124, %127 : vector<128x128xf32>
    %129 = arith.truncf %128 : vector<128x128xf32> to vector<128x128xbf16>
    %cst_91 = arith.constant dense<0.000000e+00> : vector<128x128xf32>
    %130 = tpu.matmul %0, %129, %cst_91 {dimension_numbers = #tpu.dot_dimension_numbers<[1], [0], [0], [1], [0, 0, 1, 1], [], []>} : vector<128x128xbf16>, vector<128x128xbf16>, vector<128x128xf32> -> vector<128x128xf32>
    %131 = arith.truncf %130 : vector<128x128xf32> to vector<128x128xbf16>
    %c4 = arith.constant 4 : index
    %c0_92 = arith.constant 0 : index
    %c0_93 = arith.constant 0 : index
    %132 = vector.load %arg2[%c4, %c0_92, %c0_93] : memref<5x128x128xbf16, #tpu.memory_space<vmem>>, vector<1x128x128xbf16>
    %133 = vector.shape_cast %132 : vector<1x128x128xbf16> to vector<128x128xbf16>
    %cst_94 = arith.constant dense<0.000000e+00> : vector<128x128xf32>
    %134 = tpu.matmul %131, %133, %cst_94 {dimension_numbers = #tpu.dot_dimension_numbers<[1], [0], [0], [1], [0, 0, 1, 1], [], []>} : vector<128x128xbf16>, vector<128x128xbf16>, vector<128x128xf32> -> vector<128x128xf32>
    %c4_95 = arith.constant 4 : index
    %c0_96 = arith.constant 0 : index
    %c0_97 = arith.constant 0 : index
    %135 = vector.load %arg3[%c4_95, %c0_96, %c0_97] : memref<5x1x128xf32, #tpu.memory_space<vmem>>, vector<1x1x128xf32>
    %136 = vector.shape_cast %135 : vector<1x1x128xf32> to vector<1x128xf32>
    %137 = vector.broadcast %136 : vector<1x128xf32> to vector<128x128xf32>
    %138 = arith.addf %134, %137 : vector<128x128xf32>
    %cst_98 = arith.constant 0.000000e+00 : f32
    %139 = vector.broadcast %cst_98 : f32 to vector<128x128xf32>
    %140 = arith.cmpf ogt, %138, %139 : vector<128x128xf32>
    %cst_99 = arith.constant 2.500000e-01 : f32
    %141 = vector.broadcast %cst_99 : f32 to vector<128x128xf32>
    %142 = arith.mulf %141, %138 : vector<128x128xf32>
    %143 = arith.select %140, %138, %142 : vector<128x128xi1>, vector<128x128xf32>
    %144 = arith.truncf %143 : vector<128x128xf32> to vector<128x128xbf16>
    %c4_100 = arith.constant 4 : index
    %c0_101 = arith.constant 0 : index
    %c0_102 = arith.constant 0 : index
    %145 = vector.load %arg4[%c4_100, %c0_101, %c0_102] : memref<5x128x128xbf16, #tpu.memory_space<vmem>>, vector<1x128x128xbf16>
    %146 = vector.shape_cast %145 : vector<1x128x128xbf16> to vector<128x128xbf16>
    %cst_103 = arith.constant dense<0.000000e+00> : vector<128x128xf32>
    %147 = tpu.matmul %144, %146, %cst_103 {dimension_numbers = #tpu.dot_dimension_numbers<[1], [0], [0], [1], [0, 0, 1, 1], [], []>} : vector<128x128xbf16>, vector<128x128xbf16>, vector<128x128xf32> -> vector<128x128xf32>
    %c4_104 = arith.constant 4 : index
    %c0_105 = arith.constant 0 : index
    %c0_106 = arith.constant 0 : index
    %148 = vector.load %arg5[%c4_104, %c0_105, %c0_106] : memref<5x1x128xf32, #tpu.memory_space<vmem>>, vector<1x1x128xf32>
    %149 = vector.shape_cast %148 : vector<1x1x128xf32> to vector<1x128xf32>
    %150 = vector.broadcast %149 : vector<1x128xf32> to vector<128x128xf32>
    %151 = arith.addf %147, %150 : vector<128x128xf32>
    %cst_107 = arith.constant 0.000000e+00 : f32
    %152 = vector.broadcast %cst_107 : f32 to vector<128x128xf32>
    %153 = arith.cmpf ogt, %151, %152 : vector<128x128xf32>
    %cst_108 = arith.constant 2.500000e-01 : f32
    %154 = vector.broadcast %cst_108 : f32 to vector<128x128xf32>
    %155 = arith.mulf %154, %151 : vector<128x128xf32>
    %156 = arith.select %153, %151, %155 : vector<128x128xi1>, vector<128x128xf32>
    %c4_109 = arith.constant 4 : index
    %c0_110 = arith.constant 0 : index
    %c0_111 = arith.constant 0 : index
    %157 = vector.load %arg6[%c4_109, %c0_110, %c0_111] : memref<5x128x128xbf16, #tpu.memory_space<vmem>>, vector<1x128x128xbf16>
    %158 = vector.shape_cast %157 : vector<1x128x128xbf16> to vector<128x128xbf16>
    %cst_112 = arith.constant dense<0.000000e+00> : vector<128x128xf32>
    %159 = tpu.matmul %129, %158, %cst_112 {dimension_numbers = #tpu.dot_dimension_numbers<[1], [0], [0], [1], [0, 0, 1, 1], [], []>} : vector<128x128xbf16>, vector<128x128xbf16>, vector<128x128xf32> -> vector<128x128xf32>
    %160 = arith.addf %156, %159 : vector<128x128xf32>
    %c0_113 = arith.constant 0 : index
    %c0_114 = arith.constant 0 : index
    %161 = vector.load %arg7[%c0_113, %c0_114] : memref<128x128xf32, #tpu.memory_space<vmem>>, vector<128x128xf32>
    tpu.vector_store %arg7[%c0_113, %c0_114], %160 {strides = array<i32>} : memref<128x128xf32, #tpu.memory_space<vmem>>, vector<128x128xf32>,
    return
  }
}

</mosaic_0001>

<llo_original>
// kernel: forward.1
$region0: #{forward.1}
  #allocation0 [shape = 'u32[]', space=smem, size = 0x4, offset = 0x4, fixed_abs, tag = 'smem constant byte address 0x4 - core index']
  #allocation1 [shape = 'u32[72,128]{1,0:T(1,128)}', space=vmem, size = 0x9000, scoped, tag = 'internal scratch']
  %s0 = inlined_call_operand.vmem [shape: bf16[128,128], index: 0, kind: input, shape index: {}]
  %s1 = inlined_call_operand.vmem [shape: bf16[128,128], index: 1, kind: input, shape index: {}]
  %s2 = inlined_call_operand.vmem [shape: bf16[5,128,128], index: 2, kind: input, shape index: {}]
  %s3 = inlined_call_operand.vmem [shape: f32[5,1,128], index: 3, kind: input, shape index: {}]
  %s4 = inlined_call_operand.vmem [shape: bf16[5,128,128], index: 4, kind: input, shape index: {}]
  %s5 = inlined_call_operand.vmem [shape: f32[5,1,128], index: 5, kind: input, shape index: {}]
  %s6 = inlined_call_operand.vmem [shape: bf16[5,128,128], index: 6, kind: input, shape index: {}]
  %s7 = inlined_call_operand.vmem [shape: f32[128,128], index: 7, kind: output, shape index: {}]
  %s8 = sld [smem:[#allocation0]]
  $region38: #{forward.1} parent=0
    _
  %s10 = ssub.s32 1, %s8
  %s11 = scalar_select 0, %s10, %s8
  // Predicated region
  $region2: #{forward.1} parent=0 // pred_check
    _
  $region3: #{forward.1} parent=0 // pred_check_branch
    %13 = sbr.rel (0) target = $region5
  $region4: #{forward.1} parent=0 // pred_region
    _
  $region5: #{forward.1} parent=0 // pred_fallthru
    _
  // Predicated region
  $region6: #{forward.1} parent=0 // pred_check
    _
  $region7: #{forward.1} parent=0 // pred_check_branch
    %15 = sbr.rel (0) target = $region9
  $region8: #{forward.1} parent=0 // pred_region
    _
  $region9: #{forward.1} parent=0 // pred_fallthru
    _
  // Predicated region
  $region10: #{forward.1} parent=0 // pred_check
    _
  $region11: #{forward.1} parent=0 // pred_check_branch
    %17 = sbr.rel (0) target = $region13
  $region12: #{forward.1} parent=0 // pred_region
    _
  $region13: #{forward.1} parent=0 // pred_fallthru
    _
  // Predicated region
  $region14: #{forward.1} parent=0 // pred_check
    _
  $region15: #{forward.1} parent=0 // pred_check_branch
    %19 = sbr.rel (0) target = $region17
  $region16: #{forward.1} parent=0 // pred_region
    _
  $region17: #{forward.1} parent=0 // pred_fallthru
    _
  // Predicated region
  $region18: #{forward.1} parent=0 // pred_check
    _
  $region19: #{forward.1} parent=0 // pred_check_branch
    %21 = sbr.rel (0) target = $region21
  $region20: #{forward.1} parent=0 // pred_region
    _
  $region21: #{forward.1} parent=0 // pred_fallthru
    _
  // Predicated region
  $region22: #{forward.1} parent=0 // pred_check
    _
  $region23: #{forward.1} parent=0 // pred_check_branch
    %23 = sbr.rel (0) target = $region25
  $region24: #{forward.1} parent=0 // pred_region
    _
  $region25: #{forward.1} parent=0 // pred_fallthru
    _
  // Predicated region
  $region26: #{forward.1} parent=0 // pred_check
    _
  $region27: #{forward.1} parent=0 // pred_check_branch
    %25 = sbr.rel (0) target = $region29
  $region28: #{forward.1} parent=0 // pred_region
    _
  $region29: #{forward.1} parent=0 // pred_fallthru
    _
  %v26 = vld [vmem:[%s0] sm:$0xf]
  %v27 = vld [vmem:[%s0 + $0x4] sm:$0xf]
  %v28 = vld [vmem:[%s0 + $0x8] sm:$0xf]
  %v29 = vld [vmem:[%s0 + $0xc] sm:$0xf]
  %v30 = vld [vmem:[%s0 + $0x10] sm:$0xf]
  %v31 = vld [vmem:[%s0 + $0x14] sm:$0xf]
  %v32 = vld [vmem:[%s0 + $0x18] sm:$0xf]
  %v33 = vld [vmem:[%s0 + $0x1c] sm:$0xf]
  %v34 = vld [vmem:[%s0 + $0x20] sm:$0xf]
  %v35 = vld [vmem:[%s0 + $0x24] sm:$0xf]
  %v36 = vld [vmem:[%s0 + $0x28] sm:$0xf]
  %v37 = vld [vmem:[%s0 + $0x2c] sm:$0xf]
  %v38 = vld [vmem:[%s0 + $0x30] sm:$0xf]
  %v39 = vld [vmem:[%s0 + $0x34] sm:$0xf]
  %v40 = vld [vmem:[%s0 + $0x38] sm:$0xf]
  %v41 = vld [vmem:[%s0 + $0x3c] sm:$0xf]
  %v42 = vld [vmem:[%s1] sm:$0xf]
  %v43 = vld [vmem:[%s1 + $0x4] sm:$0xf]
  %v44 = vld [vmem:[%s1 + $0x8] sm:$0xf]
  %v45 = vld [vmem:[%s1 + $0xc] sm:$0xf]
  %v46 = vld [vmem:[%s1 + $0x10] sm:$0xf]
  %v47 = vld [vmem:[%s1 + $0x14] sm:$0xf]
  %v48 = vld [vmem:[%s1 + $0x18] sm:$0xf]
  %v49 = vld [vmem:[%s1 + $0x1c] sm:$0xf]
  %v50 = vld [vmem:[%s1 + $0x20] sm:$0xf]
  %v51 = vld [vmem:[%s1 + $0x24] sm:$0xf]
  %v52 = vld [vmem:[%s1 + $0x28] sm:$0xf]
  %v53 = vld [vmem:[%s1 + $0x2c] sm:$0xf]
  %v54 = vld [vmem:[%s1 + $0x30] sm:$0xf]
  %v55 = vld [vmem:[%s1 + $0x34] sm:$0xf]
  %v56 = vld [vmem:[%s1 + $0x38] sm:$0xf]
  %v57 = vld [vmem:[%s1 + $0x3c] sm:$0xf]
  %v74 = vunpack.c.l.b16 %v26
  %v75 = vunpack.c.l.b16 %v27
  %v76 = vunpack.c.l.b16 %v28
  %v77 = vunpack.c.l.b16 %v29
  %v78 = vunpack.c.l.b16 %v30
  %v79 = vunpack.c.l.b16 %v31
  %v80 = vunpack.c.l.b16 %v32
  %v81 = vunpack.c.l.b16 %v33
  %v82 = vunpack.c.l.b16 %v34
  %v83 = vunpack.c.l.b16 %v35
  %v84 = vunpack.c.l.b16 %v36
  %v85 = vunpack.c.l.b16 %v37
  %v86 = vunpack.c.l.b16 %v38
  %v87 = vunpack.c.l.b16 %v39
  %v88 = vunpack.c.l.b16 %v40
  %v89 = vunpack.c.l.b16 %v41
  %v90 = vpack.c.b16 %v75, %v74
  %v91 = vpack.c.b16 %v77, %v76
  %v92 = vpack.c.b16 %v79, %v78
  %v93 = vpack.c.b16 %v81, %v80
  %v94 = vpack.c.b16 %v83, %v82
  %v95 = vpack.c.b16 %v85, %v84
  %v96 = vpack.c.b16 %v87, %v86
  %v97 = vpack.c.b16 %v89, %v88
  %v122 = vunpack.c.l.b16 %v42
  %v123 = vunpack.c.l.b16 %v43
  %v124 = vunpack.c.l.b16 %v44
  %v125 = vunpack.c.l.b16 %v45
  %v126 = vunpack.c.l.b16 %v46
  %v127 = vunpack.c.l.b16 %v47
  %v128 = vunpack.c.l.b16 %v48
  %v129 = vunpack.c.l.b16 %v49
  %v130 = vunpack.c.l.b16 %v50
  %v131 = vunpack.c.l.b16 %v51
  %v132 = vunpack.c.l.b16 %v52
  %v133 = vunpack.c.l.b16 %v53
  %v134 = vunpack.c.l.b16 %v54
  %v135 = vunpack.c.l.b16 %v55
  %v136 = vunpack.c.l.b16 %v56
  %v137 = vunpack.c.l.b16 %v57
  %v138 = vpack.c.b16 %v123, %v122
  %v139 = vpack.c.b16 %v125, %v124
  %v140 = vpack.c.b16 %v127, %v126
  %v141 = vpack.c.b16 %v129, %v128
  %v142 = vpack.c.b16 %v131, %v130
  %v143 = vpack.c.b16 %v133, %v132
  %v144 = vpack.c.b16 %v135, %v134
  %v145 = vpack.c.b16 %v137, %v136
  %154 = vmatpush.bf16.msra.mxu0 %v145
  %155 = vmatpush.bf16.msra.mxu0 %v144
  %156 = vmatpush.bf16.msra.mxu0 %v143
  %157 = vmatpush.bf16.msra.mxu0 %v142
  %158 = vmatpush.bf16.msra.mxu0 %v141
  %159 = vmatpush.bf16.msra.mxu0 %v140
  %160 = vmatpush.bf16.msra.mxu0 %v139
  %161 = vmatpush.bf16.msra.mxu0 %v138
  %162 = vmatmul.bf16.gmra.mxu0 %v90
  %v163 = vpop.f32.mrf.mxu0
  %v164 = vadd.f32 0.0, %v163
  %v165 = vpop.f32.mrf.mxu0
  %v166 = vadd.f32 0.0, %v165
  %167 = vmatmul.bf16.gmra.mxu0 %v91
  %v168 = vpop.f32.mrf.mxu0
  %v169 = vadd.f32 0.0, %v168
  %v170 = vpop.f32.mrf.mxu0
  %v171 = vadd.f32 0.0, %v170
  %172 = vmatmul.bf16.gmra.mxu0 %v92
  %v173 = vpop.f32.mrf.mxu0
  %v174 = vadd.f32 0.0, %v173
  %v175 = vpop.f32.mrf.mxu0
  %v176 = vadd.f32 0.0, %v175
  %177 = vmatmul.bf16.gmra.mxu0 %v93
  %v178 = vpop.f32.mrf.mxu0
  %v179 = vadd.f32 0.0, %v178
  %v180 = vpop.f32.mrf.mxu0
  %v181 = vadd.f32 0.0, %v180
  %182 = vmatmul.bf16.gmra.mxu0 %v94
  %v183 = vpop.f32.mrf.mxu0
  %v184 = vadd.f32 0.0, %v183
  %v185 = vpop.f32.mrf.mxu0
  %v186 = vadd.f32 0.0, %v185
  %187 = vmatmul.bf16.gmra.mxu0 %v95
  %v188 = vpop.f32.mrf.mxu0
  %v189 = vadd.f32 0.0, %v188
  %v190 = vpop.f32.mrf.mxu0
  %v191 = vadd.f32 0.0, %v190
  %192 = vmatmul.bf16.gmra.mxu0 %v96
  %v193 = vpop.f32.mrf.mxu0
  %v194 = vadd.f32 0.0, %v193
  %v195 = vpop.f32.mrf.mxu0
  %v196 = vadd.f32 0.0, %v195
  %197 = vmatmul.bf16.gmra.mxu0 %v97
  %v198 = vpop.f32.mrf.mxu0
  %v199 = vadd.f32 0.0, %v198
  %v200 = vpop.f32.mrf.mxu0
  %v201 = vadd.f32 0.0, %v200
  %202 = vdwg.mxu0
  %v203 = vpack.c.bf16 %v166, %v164
  %v204 = vpack.c.bf16 %v171, %v169
  %v205 = vpack.c.bf16 %v176, %v174
  %v206 = vpack.c.bf16 %v181, %v179
  %v207 = vpack.c.bf16 %v186, %v184
  %v208 = vpack.c.bf16 %v191, %v189
  %v209 = vpack.c.bf16 %v196, %v194
  %v210 = vpack.c.bf16 %v201, %v199
  %v211 = vld [vmem:[%s2] sm:$0xf]
  %v212 = vld [vmem:[%s2 + $0x4] sm:$0xf]
  %v213 = vld [vmem:[%s2 + $0x8] sm:$0xf]
  %v214 = vld [vmem:[%s2 + $0xc] sm:$0xf]
  %v215 = vld [vmem:[%s2 + $0x10] sm:$0xf]
  %v216 = vld [vmem:[%s2 + $0x14] sm:$0xf]
  %v217 = vld [vmem:[%s2 + $0x18] sm:$0xf]
  %v218 = vld [vmem:[%s2 + $0x1c] sm:$0xf]
  %v219 = vld [vmem:[%s2 + $0x20] sm:$0xf]
  %v220 = vld [vmem:[%s2 + $0x24] sm:$0xf]
  %v221 = vld [vmem:[%s2 + $0x28] sm:$0xf]
  %v222 = vld [vmem:[%s2 + $0x2c] sm:$0xf]
  %v223 = vld [vmem:[%s2 + $0x30] sm:$0xf]
  %v224 = vld [vmem:[%s2 + $0x34] sm:$0xf]
  %v225 = vld [vmem:[%s2 + $0x38] sm:$0xf]
  %v226 = vld [vmem:[%s2 + $0x3c] sm:$0xf]
  %v227 = vld [vmem:[%s3] sm:$0x1]
  %v229 = vperm.slane %v227, 0
  %v247 = vunpack.c.l.b16 %v211
  %v248 = vunpack.c.l.b16 %v212
  %v249 = vunpack.c.l.b16 %v213
  %v250 = vunpack.c.l.b16 %v214
  %v251 = vunpack.c.l.b16 %v215
  %v252 = vunpack.c.l.b16 %v216
  %v253 = vunpack.c.l.b16 %v217
  %v254 = vunpack.c.l.b16 %v218
  %v255 = vunpack.c.l.b16 %v219
  %v256 = vunpack.c.l.b16 %v220
  %v257 = vunpack.c.l.b16 %v221
  %v258 = vunpack.c.l.b16 %v222
  %v259 = vunpack.c.l.b16 %v223
  %v260 = vunpack.c.l.b16 %v224
  %v261 = vunpack.c.l.b16 %v225
  %v262 = vunpack.c.l.b16 %v226
  %v263 = vpack.c.b16 %v248, %v247
  %v264 = vpack.c.b16 %v250, %v249
  %v265 = vpack.c.b16 %v252, %v251
  %v266 = vpack.c.b16 %v254, %v253
  %v267 = vpack.c.b16 %v256, %v255
  %v268 = vpack.c.b16 %v258, %v257
  %v269 = vpack.c.b16 %v260, %v259
  %v270 = vpack.c.b16 %v262, %v261
  %279 = vmatpush.bf16.msra.mxu0 %v270
  %280 = vmatpush.bf16.msra.mxu0 %v269
  %281 = vmatpush.bf16.msra.mxu0 %v268
  %282 = vmatpush.bf16.msra.mxu0 %v267
  %283 = vmatpush.bf16.msra.mxu0 %v266
  %284 = vmatpush.bf16.msra.mxu0 %v265
  %285 = vmatpush.bf16.msra.mxu0 %v264
  %286 = vmatpush.bf16.msra.mxu0 %v263
  %287 = vmatmul.bf16.gmra.mxu0 %v203
  %v288 = vpop.f32.mrf.mxu0
  %v289 = vadd.f32 %v229, %v288
  %v290 = vpop.f32.mrf.mxu0
  %v291 = vadd.f32 %v229, %v290
  %292 = vmatmul.bf16.gmra.mxu0 %v204
  %v293 = vpop.f32.mrf.mxu0
  %v294 = vadd.f32 %v229, %v293
  %v295 = vpop.f32.mrf.mxu0
  %v296 = vadd.f32 %v229, %v295
  %297 = vmatmul.bf16.gmra.mxu0 %v205
  %v298 = vpop.f32.mrf.mxu0
  %v299 = vadd.f32 %v229, %v298
  %v300 = vpop.f32.mrf.mxu0
  %v301 = vadd.f32 %v229, %v300
  %302 = vmatmul.bf16.gmra.mxu0 %v206
  %v303 = vpop.f32.mrf.mxu0
  %v304 = vadd.f32 %v229, %v303
  %v305 = vpop.f32.mrf.mxu0
  %v306 = vadd.f32 %v229, %v305
  %307 = vmatmul.bf16.gmra.mxu0 %v207
  %v308 = vpop.f32.mrf.mxu0
  %v309 = vadd.f32 %v229, %v308
  %v310 = vpop.f32.mrf.mxu0
  %v311 = vadd.f32 %v229, %v310
  %312 = vmatmul.bf16.gmra.mxu0 %v208
  %v313 = vpop.f32.mrf.mxu0
  %v314 = vadd.f32 %v229, %v313
  %v315 = vpop.f32.mrf.mxu0
  %v316 = vadd.f32 %v229, %v315
  %317 = vmatmul.bf16.gmra.mxu0 %v209
  %v318 = vpop.f32.mrf.mxu0
  %v319 = vadd.f32 %v229, %v318
  %v320 = vpop.f32.mrf.mxu0
  %v321 = vadd.f32 %v229, %v320
  %322 = vmatmul.bf16.gmra.mxu0 %v210
  %v323 = vpop.f32.mrf.mxu0
  %v324 = vadd.f32 %v229, %v323
  %v325 = vpop.f32.mrf.mxu0
  %v326 = vadd.f32 %v229, %v325
  %327 = vdwg.mxu0
  %vm328 = vcmp.gt.f32.partialorder %v289, 0.0
  %vm329 = vcmp.gt.f32.partialorder %v291, 0.0
  %vm330 = vcmp.gt.f32.partialorder %v294, 0.0
  %vm331 = vcmp.gt.f32.partialorder %v296, 0.0
  %vm332 = vcmp.gt.f32.partialorder %v299, 0.0
  %vm333 = vcmp.gt.f32.partialorder %v301, 0.0
  %vm334 = vcmp.gt.f32.partialorder %v304, 0.0
  %vm335 = vcmp.gt.f32.partialorder %v306, 0.0
  %vm336 = vcmp.gt.f32.partialorder %v309, 0.0
  %vm337 = vcmp.gt.f32.partialorder %v311, 0.0
  %vm338 = vcmp.gt.f32.partialorder %v314, 0.0
  %vm339 = vcmp.gt.f32.partialorder %v316, 0.0
  %vm340 = vcmp.gt.f32.partialorder %v319, 0.0
  %vm341 = vcmp.gt.f32.partialorder %v321, 0.0
  %vm342 = vcmp.gt.f32.partialorder %v324, 0.0
  %vm343 = vcmp.gt.f32.partialorder %v326, 0.0
  %v344 = vmul.f32 %v289, 0.25
  %v345 = vmul.f32 %v291, 0.25
  %v346 = vmul.f32 %v294, 0.25
  %v347 = vmul.f32 %v296, 0.25
  %v348 = vmul.f32 %v299, 0.25
  %v349 = vmul.f32 %v301, 0.25
  %v350 = vmul.f32 %v304, 0.25
  %v351 = vmul.f32 %v306, 0.25
  %v352 = vmul.f32 %v309, 0.25
  %v353 = vmul.f32 %v311, 0.25
  %v354 = vmul.f32 %v314, 0.25
  %v355 = vmul.f32 %v316, 0.25
  %v356 = vmul.f32 %v319, 0.25
  %v357 = vmul.f32 %v321, 0.25
  %v358 = vmul.f32 %v324, 0.25
  %v359 = vmul.f32 %v326, 0.25
  %v360 = vsel %vm328, %v289, %v344
  %v361 = vsel %vm329, %v291, %v345
  %v362 = vsel %vm330, %v294, %v346
  %v363 = vsel %vm331, %v296, %v347
  %v364 = vsel %vm332, %v299, %v348
  %v365 = vsel %vm333, %v301, %v349
  %v366 = vsel %vm334, %v304, %v350
  %v367 = vsel %vm335, %v306, %v351
  %v368 = vsel %vm336, %v309, %v352
  %v369 = vsel %vm337, %v311, %v353
  %v370 = vsel %vm338, %v314, %v354
  %v371 = vsel %vm339, %v316, %v355
  %v372 = vsel %vm340, %v319, %v356
  %v373 = vsel %vm341, %v321, %v357
  %v374 = vsel %vm342, %v324, %v358
  %v375 = vsel %vm343, %v326, %v359
  %v376 = vpack.c.bf16 %v361, %v360
  %v377 = vpack.c.bf16 %v363, %v362
  %v378 = vpack.c.bf16 %v365, %v364
  %v379 = vpack.c.bf16 %v367, %v366
  %v380 = vpack.c.bf16 %v369, %v368
  %v381 = vpack.c.bf16 %v371, %v370
  %v382 = vpack.c.bf16 %v373, %v372
  %v383 = vpack.c.bf16 %v375, %v374
  %v384 = vld [vmem:[%s4] sm:$0xf]
  %v385 = vld [vmem:[%s4 + $0x4] sm:$0xf]
  %v386 = vld [vmem:[%s4 + $0x8] sm:$0xf]
  %v387 = vld [vmem:[%s4 + $0xc] sm:$0xf]
  %v388 = vld [vmem:[%s4 + $0x10] sm:$0xf]
  %v389 = vld [vmem:[%s4 + $0x14] sm:$0xf]
  %v390 = vld [vmem:[%s4 + $0x18] sm:$0xf]
  %v391 = vld [vmem:[%s4 + $0x1c] sm:$0xf]
  %v392 = vld [vmem:[%s4 + $0x20] sm:$0xf]
  %v393 = vld [vmem:[%s4 + $0x24] sm:$0xf]
  %v394 = vld [vmem:[%s4 + $0x28] sm:$0xf]
  %v395 = vld [vmem:[%s4 + $0x2c] sm:$0xf]
  %v396 = vld [vmem:[%s4 + $0x30] sm:$0xf]
  %v397 = vld [vmem:[%s4 + $0x34] sm:$0xf]
  %v398 = vld [vmem:[%s4 + $0x38] sm:$0xf]
  %v399 = vld [vmem:[%s4 + $0x3c] sm:$0xf]
  %v400 = vld [vmem:[%s5] sm:$0x1]
  %v402 = vperm.slane %v400, 0
  %v420 = vunpack.c.l.b16 %v384
  %v421 = vunpack.c.l.b16 %v385
  %v422 = vunpack.c.l.b16 %v386
  %v423 = vunpack.c.l.b16 %v387
  %v424 = vunpack.c.l.b16 %v388
  %v425 = vunpack.c.l.b16 %v389
  %v426 = vunpack.c.l.b16 %v390
  %v427 = vunpack.c.l.b16 %v391
  %v428 = vunpack.c.l.b16 %v392
  %v429 = vunpack.c.l.b16 %v393
  %v430 = vunpack.c.l.b16 %v394
  %v431 = vunpack.c.l.b16 %v395
  %v432 = vunpack.c.l.b16 %v396
  %v433 = vunpack.c.l.b16 %v397
  %v434 = vunpack.c.l.b16 %v398
  %v435 = vunpack.c.l.b16 %v399
  %v436 = vpack.c.b16 %v421, %v420
  %v437 = vpack.c.b16 %v423, %v422
  %v438 = vpack.c.b16 %v425, %v424
  %v439 = vpack.c.b16 %v427, %v426
  %v440 = vpack.c.b16 %v429, %v428
  %v441 = vpack.c.b16 %v431, %v430
  %v442 = vpack.c.b16 %v433, %v432
  %v443 = vpack.c.b16 %v435, %v434
  %452 = vmatpush.bf16.msra.mxu0 %v443
  %453 = vmatpush.bf16.msra.mxu0 %v442
  %454 = vmatpush.bf16.msra.mxu0 %v441
  %455 = vmatpush.bf16.msra.mxu0 %v440
  %456 = vmatpush.bf16.msra.mxu0 %v439
  %457 = vmatpush.bf16.msra.mxu0 %v438
  %458 = vmatpush.bf16.msra.mxu0 %v437
  %459 = vmatpush.bf16.msra.mxu0 %v436
  %460 = vmatmul.bf16.gmra.mxu0 %v376
  %v461 = vpop.f32.mrf.mxu0
  %v462 = vadd.f32 %v402, %v461
  %v463 = vpop.f32.mrf.mxu0
  %v464 = vadd.f32 %v402, %v463
  %465 = vmatmul.bf16.gmra.mxu0 %v377
  %v466 = vpop.f32.mrf.mxu0
  %v467 = vadd.f32 %v402, %v466
  %v468 = vpop.f32.mrf.mxu0
  %v469 = vadd.f32 %v402, %v468
  %470 = vmatmul.bf16.gmra.mxu0 %v378
  %v471 = vpop.f32.mrf.mxu0
  %v472 = vadd.f32 %v402, %v471
  %v473 = vpop.f32.mrf.mxu0
  %v474 = vadd.f32 %v402, %v473
  %475 = vmatmul.bf16.gmra.mxu0 %v379
  %v476 = vpop.f32.mrf.mxu0
  %v477 = vadd.f32 %v402, %v476
  %v478 = vpop.f32.mrf.mxu0
  %v479 = vadd.f32 %v402, %v478
  %480 = vmatmul.bf16.gmra.mxu0 %v380
  %v481 = vpop.f32.mrf.mxu0
  %v482 = vadd.f32 %v402, %v481
  %v483 = vpop.f32.mrf.mxu0
  %v484 = vadd.f32 %v402, %v483
  %485 = vmatmul.bf16.gmra.mxu0 %v381
  %v486 = vpop.f32.mrf.mxu0
  %v487 = vadd.f32 %v402, %v486
  %v488 = vpop.f32.mrf.mxu0
  %v489 = vadd.f32 %v402, %v488
  %490 = vmatmul.bf16.gmra.mxu0 %v382
  %v491 = vpop.f32.mrf.mxu0
  %v492 = vadd.f32 %v402, %v491
  %v493 = vpop.f32.mrf.mxu0
  %v494 = vadd.f32 %v402, %v493
  %495 = vmatmul.bf16.gmra.mxu0 %v383
  %v496 = vpop.f32.mrf.mxu0
  %v497 = vadd.f32 %v402, %v496
  %v498 = vpop.f32.mrf.mxu0
  %v499 = vadd.f32 %v402, %v498
  %500 = vdwg.mxu0
  %vm501 = vcmp.gt.f32.partialorder %v462, 0.0
  %vm502 = vcmp.gt.f32.partialorder %v464, 0.0
  %vm503 = vcmp.gt.f32.partialorder %v467, 0.0
  %vm504 = vcmp.gt.f32.partialorder %v469, 0.0
  %vm505 = vcmp.gt.f32.partialorder %v472, 0.0
  %vm506 = vcmp.gt.f32.partialorder %v474, 0.0
  %vm507 = vcmp.gt.f32.partialorder %v477, 0.0
  %vm508 = vcmp.gt.f32.partialorder %v479, 0.0
  %vm509 = vcmp.gt.f32.partialorder %v482, 0.0
  %vm510 = vcmp.gt.f32.partialorder %v484, 0.0
  %vm511 = vcmp.gt.f32.partialorder %v487, 0.0
  %vm512 = vcmp.gt.f32.partialorder %v489, 0.0
  %vm513 = vcmp.gt.f32.partialorder %v492, 0.0
  %vm514 = vcmp.gt.f32.partialorder %v494, 0.0
  %vm515 = vcmp.gt.f32.partialorder %v497, 0.0
  %vm516 = vcmp.gt.f32.partialorder %v499, 0.0
  %v517 = vmul.f32 %v462, 0.25
  %v518 = vmul.f32 %v464, 0.25
  %v519 = vmul.f32 %v467, 0.25
  %v520 = vmul.f32 %v469, 0.25
  %v521 = vmul.f32 %v472, 0.25
  %v522 = vmul.f32 %v474, 0.25
  %v523 = vmul.f32 %v477, 0.25
  %v524 = vmul.f32 %v479, 0.25
  %v525 = vmul.f32 %v482, 0.25
  %v526 = vmul.f32 %v484, 0.25
  %v527 = vmul.f32 %v487, 0.25
  %v528 = vmul.f32 %v489, 0.25
  %v529 = vmul.f32 %v492, 0.25
  %v530 = vmul.f32 %v494, 0.25
  %v531 = vmul.f32 %v497, 0.25
  %v532 = vmul.f32 %v499, 0.25
  %v533 = vsel %vm501, %v462, %v517
  %v534 = vsel %vm502, %v464, %v518
  %v535 = vsel %vm503, %v467, %v519
  %v536 = vsel %vm504, %v469, %v520
  %v537 = vsel %vm505, %v472, %v521
  %v538 = vsel %vm506, %v474, %v522
  %v539 = vsel %vm507, %v477, %v523
  %v540 = vsel %vm508, %v479, %v524
  %v541 = vsel %vm509, %v482, %v525
  %v542 = vsel %vm510, %v484, %v526
  %v543 = vsel %vm511, %v487, %v527
  %v544 = vsel %vm512, %v489, %v528
  %v545 = vsel %vm513, %v492, %v529
  %v546 = vsel %vm514, %v494, %v530
  %v547 = vsel %vm515, %v497, %v531
  %v548 = vsel %vm516, %v499, %v532
  %v549 = vld [vmem:[%s6] sm:$0xf]
  %v550 = vld [vmem:[%s6 + $0x4] sm:$0xf]
  %v551 = vld [vmem:[%s6 + $0x8] sm:$0xf]
  %v552 = vld [vmem:[%s6 + $0xc] sm:$0xf]
  %v553 = vld [vmem:[%s6 + $0x10] sm:$0xf]
  %v554 = vld [vmem:[%s6 + $0x14] sm:$0xf]
  %v555 = vld [vmem:[%s6 + $0x18] sm:$0xf]
  %v556 = vld [vmem:[%s6 + $0x1c] sm:$0xf]
  %v557 = vld [vmem:[%s6 + $0x20] sm:$0xf]
  %v558 = vld [vmem:[%s6 + $0x24] sm:$0xf]
  %v559 = vld [vmem:[%s6 + $0x28] sm:$0xf]
  %v560 = vld [vmem:[%s6 + $0x2c] sm:$0xf]
  %v561 = vld [vmem:[%s6 + $0x30] sm:$0xf]
  %v562 = vld [vmem:[%s6 + $0x34] sm:$0xf]
  %v563 = vld [vmem:[%s6 + $0x38] sm:$0xf]
  %v564 = vld [vmem:[%s6 + $0x3c] sm:$0xf]
  %v581 = vunpack.c.l.b16 %v549
  %v582 = vunpack.c.l.b16 %v550
  %v583 = vunpack.c.l.b16 %v551
  %v584 = vunpack.c.l.b16 %v552
  %v585 = vunpack.c.l.b16 %v553
  %v586 = vunpack.c.l.b16 %v554
  %v587 = vunpack.c.l.b16 %v555
  %v588 = vunpack.c.l.b16 %v556
  %v589 = vunpack.c.l.b16 %v557
  %v590 = vunpack.c.l.b16 %v558
  %v591 = vunpack.c.l.b16 %v559
  %v592 = vunpack.c.l.b16 %v560
  %v593 = vunpack.c.l.b16 %v561
  %v594 = vunpack.c.l.b16 %v562
  %v595 = vunpack.c.l.b16 %v563
  %v596 = vunpack.c.l.b16 %v564
  %v597 = vpack.c.b16 %v582, %v581
  %v598 = vpack.c.b16 %v584, %v583
  %v599 = vpack.c.b16 %v586, %v585
  %v600 = vpack.c.b16 %v588, %v587
  %v601 = vpack.c.b16 %v590, %v589
  %v602 = vpack.c.b16 %v592, %v591
  %v603 = vpack.c.b16 %v594, %v593
  %v604 = vpack.c.b16 %v596, %v595
  %613 = vmatpush.bf16.msra.mxu0 %v604
  %614 = vmatpush.bf16.msra.mxu0 %v603
  %615 = vmatpush.bf16.msra.mxu0 %v602
  %616 = vmatpush.bf16.msra.mxu0 %v601
  %617 = vmatpush.bf16.msra.mxu0 %v600
  %618 = vmatpush.bf16.msra.mxu0 %v599
  %619 = vmatpush.bf16.msra.mxu0 %v598
  %620 = vmatpush.bf16.msra.mxu0 %v597
  %621 = vmatmul.bf16.gmra.mxu0 %v138
  %v622 = vpop.f32.mrf.mxu0
  %v623 = vadd.f32 0.0, %v622
  %v624 = vpop.f32.mrf.mxu0
  %v625 = vadd.f32 0.0, %v624
  %626 = vmatmul.bf16.gmra.mxu0 %v139
  %v627 = vpop.f32.mrf.mxu0
  %v628 = vadd.f32 0.0, %v627
  %v629 = vpop.f32.mrf.mxu0
  %v630 = vadd.f32 0.0, %v629
  %631 = vmatmul.bf16.gmra.mxu0 %v140
  %v632 = vpop.f32.mrf.mxu0
  %v633 = vadd.f32 0.0, %v632
  %v634 = vpop.f32.mrf.mxu0
  %v635 = vadd.f32 0.0, %v634
  %636 = vmatmul.bf16.gmra.mxu0 %v141
  %v637 = vpop.f32.mrf.mxu0
  %v638 = vadd.f32 0.0, %v637
  %v639 = vpop.f32.mrf.mxu0
  %v640 = vadd.f32 0.0, %v639
  %641 = vmatmul.bf16.gmra.mxu0 %v142
  %v642 = vpop.f32.mrf.mxu0
  %v643 = vadd.f32 0.0, %v642
  %v644 = vpop.f32.mrf.mxu0
  %v645 = vadd.f32 0.0, %v644
  %646 = vmatmul.bf16.gmra.mxu0 %v143
  %v647 = vpop.f32.mrf.mxu0
  %v648 = vadd.f32 0.0, %v647
  %v649 = vpop.f32.mrf.mxu0
  %v650 = vadd.f32 0.0, %v649
  %651 = vmatmul.bf16.gmra.mxu0 %v144
  %v652 = vpop.f32.mrf.mxu0
  %v653 = vadd.f32 0.0, %v652
  %v654 = vpop.f32.mrf.mxu0
  %v655 = vadd.f32 0.0, %v654
  %656 = vmatmul.bf16.gmra.mxu0 %v145
  %v657 = vpop.f32.mrf.mxu0
  %v658 = vadd.f32 0.0, %v657
  %v659 = vpop.f32.mrf.mxu0
  %v660 = vadd.f32 0.0, %v659
  %661 = vdwg.mxu0
  %v662 = vadd.f32 %v533, %v623
  %v663 = vadd.f32 %v534, %v625
  %v664 = vadd.f32 %v535, %v628
  %v665 = vadd.f32 %v536, %v630
  %v666 = vadd.f32 %v537, %v633
  %v667 = vadd.f32 %v538, %v635
  %v668 = vadd.f32 %v539, %v638
  %v669 = vadd.f32 %v540, %v640
  %v670 = vadd.f32 %v541, %v643
  %v671 = vadd.f32 %v542, %v645
  %v672 = vadd.f32 %v543, %v648
  %v673 = vadd.f32 %v544, %v650
  %v674 = vadd.f32 %v545, %v653
  %v675 = vadd.f32 %v546, %v655
  %v676 = vadd.f32 %v547, %v658
  %v677 = vadd.f32 %v548, %v660
  %v678 = vpack.c.bf16 %v663, %v662
  %v679 = vpack.c.bf16 %v665, %v664
  %v680 = vpack.c.bf16 %v667, %v666
  %v681 = vpack.c.bf16 %v669, %v668
  %v682 = vpack.c.bf16 %v671, %v670
  %v683 = vpack.c.bf16 %v673, %v672
  %v684 = vpack.c.bf16 %v675, %v674
  %v685 = vpack.c.bf16 %v677, %v676
  %686 = vmatpush.bf16.msra.mxu0 %v685
  %687 = vmatpush.bf16.msra.mxu0 %v684
  %688 = vmatpush.bf16.msra.mxu0 %v683
  %689 = vmatpush.bf16.msra.mxu0 %v682
  %690 = vmatpush.bf16.msra.mxu0 %v681
  %691 = vmatpush.bf16.msra.mxu0 %v680
  %692 = vmatpush.bf16.msra.mxu0 %v679
  %693 = vmatpush.bf16.msra.mxu0 %v678
  %694 = vmatmul.bf16.gmra.mxu0 %v90
  %v695 = vpop.f32.mrf.mxu0
  %v696 = vadd.f32 0.0, %v695
  %v697 = vpop.f32.mrf.mxu0
  %v698 = vadd.f32 0.0, %v697
  %699 = vmatmul.bf16.gmra.mxu0 %v91
  %v700 = vpop.f32.mrf.mxu0
  %v701 = vadd.f32 0.0, %v700
  %v702 = vpop.f32.mrf.mxu0
  %v703 = vadd.f32 0.0, %v702
  %704 = vmatmul.bf16.gmra.mxu0 %v92
  %v705 = vpop.f32.mrf.mxu0
  %v706 = vadd.f32 0.0, %v705
  %v707 = vpop.f32.mrf.mxu0
  %v708 = vadd.f32 0.0, %v707
  %709 = vmatmul.bf16.gmra.mxu0 %v93
  %v710 = vpop.f32.mrf.mxu0
  %v711 = vadd.f32 0.0, %v710
  %v712 = vpop.f32.mrf.mxu0
  %v713 = vadd.f32 0.0, %v712
  %714 = vmatmul.bf16.gmra.mxu0 %v94
  %v715 = vpop.f32.mrf.mxu0
  %v716 = vadd.f32 0.0, %v715
  %v717 = vpop.f32.mrf.mxu0
  %v718 = vadd.f32 0.0, %v717
  %719 = vmatmul.bf16.gmra.mxu0 %v95
  %v720 = vpop.f32.mrf.mxu0
  %v721 = vadd.f32 0.0, %v720
  %v722 = vpop.f32.mrf.mxu0
  %v723 = vadd.f32 0.0, %v722
  %724 = vmatmul.bf16.gmra.mxu0 %v96
  %v725 = vpop.f32.mrf.mxu0
  %v726 = vadd.f32 0.0, %v725
  %v727 = vpop.f32.mrf.mxu0
  %v728 = vadd.f32 0.0, %v727
  %729 = vmatmul.bf16.gmra.mxu0 %v97
  %v730 = vpop.f32.mrf.mxu0
  %v731 = vadd.f32 0.0, %v730
  %v732 = vpop.f32.mrf.mxu0
  %v733 = vadd.f32 0.0, %v732
  %734 = vdwg.mxu0
  %v735 = vpack.c.bf16 %v698, %v696
  %v736 = vpack.c.bf16 %v703, %v701
  %v737 = vpack.c.bf16 %v708, %v706
  %v738 = vpack.c.bf16 %v713, %v711
  %v739 = vpack.c.bf16 %v718, %v716
  %v740 = vpack.c.bf16 %v723, %v721
  %v741 = vpack.c.bf16 %v728, %v726
  %v742 = vpack.c.bf16 %v733, %v731
  %s743 = scalar_lea.vmem %s2, 64
  %v744 = vld [vmem:[%s743] sm:$0xf]
  %v745 = vld [vmem:[%s743 + $0x4] sm:$0xf]
  %v746 = vld [vmem:[%s743 + $0x8] sm:$0xf]
  %v747 = vld [vmem:[%s743 + $0xc] sm:$0xf]
  %v748 = vld [vmem:[%s743 + $0x10] sm:$0xf]
  %v749 = vld [vmem:[%s743 + $0x14] sm:$0xf]
  %v750 = vld [vmem:[%s743 + $0x18] sm:$0xf]
  %v751 = vld [vmem:[%s743 + $0x1c] sm:$0xf]
  %v752 = vld [vmem:[%s743 + $0x20] sm:$0xf]
  %v753 = vld [vmem:[%s743 + $0x24] sm:$0xf]
  %v754 = vld [vmem:[%s743 + $0x28] sm:$0xf]
  %v755 = vld [vmem:[%s743 + $0x2c] sm:$0xf]
  %v756 = vld [vmem:[%s743 + $0x30] sm:$0xf]
  %v757 = vld [vmem:[%s743 + $0x34] sm:$0xf]
  %v758 = vld [vmem:[%s743 + $0x38] sm:$0xf]
  %v759 = vld [vmem:[%s743 + $0x3c] sm:$0xf]
  %s760 = scalar_lea.vmem %s3, 1
  %v761 = vld [vmem:[%s760] sm:$0x1]
  %v763 = vperm.slane %v761, 0
  %v781 = vunpack.c.l.b16 %v744
  %v782 = vunpack.c.l.b16 %v745
  %v783 = vunpack.c.l.b16 %v746
  %v784 = vunpack.c.l.b16 %v747
  %v785 = vunpack.c.l.b16 %v748
  %v786 = vunpack.c.l.b16 %v749
  %v787 = vunpack.c.l.b16 %v750
  %v788 = vunpack.c.l.b16 %v751
  %v789 = vunpack.c.l.b16 %v752
  %v790 = vunpack.c.l.b16 %v753
  %v791 = vunpack.c.l.b16 %v754
  %v792 = vunpack.c.l.b16 %v755
  %v793 = vunpack.c.l.b16 %v756
  %v794 = vunpack.c.l.b16 %v757
  %v795 = vunpack.c.l.b16 %v758
  %v796 = vunpack.c.l.b16 %v759
  %v797 = vpack.c.b16 %v782, %v781
  %v798 = vpack.c.b16 %v784, %v783
  %v799 = vpack.c.b16 %v786, %v785
  %v800 = vpack.c.b16 %v788, %v787
  %v801 = vpack.c.b16 %v790, %v789
  %v802 = vpack.c.b16 %v792, %v791
  %v803 = vpack.c.b16 %v794, %v793
  %v804 = vpack.c.b16 %v796, %v795
  %813 = vmatpush.bf16.msra.mxu0 %v804
  %814 = vmatpush.bf16.msra.mxu0 %v803
  %815 = vmatpush.bf16.msra.mxu0 %v802
  %816 = vmatpush.bf16.msra.mxu0 %v801
  %817 = vmatpush.bf16.msra.mxu0 %v800
  %818 = vmatpush.bf16.msra.mxu0 %v799
  %819 = vmatpush.bf16.msra.mxu0 %v798
  %820 = vmatpush.bf16.msra.mxu0 %v797
  %821 = vmatmul.bf16.gmra.mxu0 %v735
  %v822 = vpop.f32.mrf.mxu0
  %v823 = vadd.f32 %v763, %v822
  %v824 = vpop.f32.mrf.mxu0
  %v825 = vadd.f32 %v763, %v824
  %826 = vmatmul.bf16.gmra.mxu0 %v736
  %v827 = vpop.f32.mrf.mxu0
  %v828 = vadd.f32 %v763, %v827
  %v829 = vpop.f32.mrf.mxu0
  %v830 = vadd.f32 %v763, %v829
  %831 = vmatmul.bf16.gmra.mxu0 %v737
  %v832 = vpop.f32.mrf.mxu0
  %v833 = vadd.f32 %v763, %v832
  %v834 = vpop.f32.mrf.mxu0
  %v835 = vadd.f32 %v763, %v834
  %836 = vmatmul.bf16.gmra.mxu0 %v738
  %v837 = vpop.f32.mrf.mxu0
  %v838 = vadd.f32 %v763, %v837
  %v839 = vpop.f32.mrf.mxu0
  %v840 = vadd.f32 %v763, %v839
  %841 = vmatmul.bf16.gmra.mxu0 %v739
  %v842 = vpop.f32.mrf.mxu0
  %v843 = vadd.f32 %v763, %v842
  %v844 = vpop.f32.mrf.mxu0
  %v845 = vadd.f32 %v763, %v844
  %846 = vmatmul.bf16.gmra.mxu0 %v740
  %v847 = vpop.f32.mrf.mxu0
  %v848 = vadd.f32 %v763, %v847
  %v849 = vpop.f32.mrf.mxu0
  %v850 = vadd.f32 %v763, %v849
  %851 = vmatmul.bf16.gmra.mxu0 %v741
  %v852 = vpop.f32.mrf.mxu0
  %v853 = vadd.f32 %v763, %v852
  %v854 = vpop.f32.mrf.mxu0
  %v855 = vadd.f32 %v763, %v854
  %856 = vmatmul.bf16.gmra.mxu0 %v742
  %v857 = vpop.f32.mrf.mxu0
  %v858 = vadd.f32 %v763, %v857
  %v859 = vpop.f32.mrf.mxu0
  %v860 = vadd.f32 %v763, %v859
  %861 = vdwg.mxu0
  %vm862 = vcmp.gt.f32.partialorder %v823, 0.0
  %vm863 = vcmp.gt.f32.partialorder %v825, 0.0
  %vm864 = vcmp.gt.f32.partialorder %v828, 0.0
  %vm865 = vcmp.gt.f32.partialorder %v830, 0.0
  %vm866 = vcmp.gt.f32.partialorder %v833, 0.0
  %vm867 = vcmp.gt.f32.partialorder %v835, 0.0
  %vm868 = vcmp.gt.f32.partialorder %v838, 0.0
  %vm869 = vcmp.gt.f32.partialorder %v840, 0.0
  %vm870 = vcmp.gt.f32.partialorder %v843, 0.0
  %vm871 = vcmp.gt.f32.partialorder %v845, 0.0
  %vm872 = vcmp.gt.f32.partialorder %v848, 0.0
  %vm873 = vcmp.gt.f32.partialorder %v850, 0.0
  %vm874 = vcmp.gt.f32.partialorder %v853, 0.0
  %vm875 = vcmp.gt.f32.partialorder %v855, 0.0
  %vm876 = vcmp.gt.f32.partialorder %v858, 0.0
  %vm877 = vcmp.gt.f32.partialorder %v860, 0.0
  %v878 = vmul.f32 %v823, 0.25
  %v879 = vmul.f32 %v825, 0.25
  %v880 = vmul.f32 %v828, 0.25
  %v881 = vmul.f32 %v830, 0.25
  %v882 = vmul.f32 %v833, 0.25
  %v883 = vmul.f32 %v835, 0.25
  %v884 = vmul.f32 %v838, 0.25
  %v885 = vmul.f32 %v840, 0.25
  %v886 = vmul.f32 %v843, 0.25
  %v887 = vmul.f32 %v845, 0.25
  %v888 = vmul.f32 %v848, 0.25
  %v889 = vmul.f32 %v850, 0.25
  %v890 = vmul.f32 %v853, 0.25
  %v891 = vmul.f32 %v855, 0.25
  %v892 = vmul.f32 %v858, 0.25
  %v893 = vmul.f32 %v860, 0.25
  %v894 = vsel %vm862, %v823, %v878
  %v895 = vsel %vm863, %v825, %v879
  %v896 = vsel %vm864, %v828, %v880
  %v897 = vsel %vm865, %v830, %v881
  %v898 = vsel %vm866, %v833, %v882
  %v899 = vsel %vm867, %v835, %v883
  %v900 = vsel %vm868, %v838, %v884
  %v901 = vsel %vm869, %v840, %v885
  %v902 = vsel %vm870, %v843, %v886
  %v903 = vsel %vm871, %v845, %v887
  %v904 = vsel %vm872, %v848, %v888
  %v905 = vsel %vm873, %v850, %v889
  %v906 = vsel %vm874, %v853, %v890
  %v907 = vsel %vm875, %v855, %v891
  %v908 = vsel %vm876, %v858, %v892
  %v909 = vsel %vm877, %v860, %v893
  %v910 = vpack.c.bf16 %v895, %v894
  %v911 = vpack.c.bf16 %v897, %v896
  %v912 = vpack.c.bf16 %v899, %v898
  %v913 = vpack.c.bf16 %v901, %v900
  %v914 = vpack.c.bf16 %v903, %v902
  %v915 = vpack.c.bf16 %v905, %v904
  %v916 = vpack.c.bf16 %v907, %v906
  %v917 = vpack.c.bf16 %v909, %v908
  %s918 = scalar_lea.vmem %s4, 64
  %v919 = vld [vmem:[%s918] sm:$0xf]
  %v920 = vld [vmem:[%s918 + $0x4] sm:$0xf]
  %v921 = vld [vmem:[%s918 + $0x8] sm:$0xf]
  %v922 = vld [vmem:[%s918 + $0xc] sm:$0xf]
  %v923 = vld [vmem:[%s918 + $0x10] sm:$0xf]
  %v924 = vld [vmem:[%s918 + $0x14] sm:$0xf]
  %v925 = vld [vmem:[%s918 + $0x18] sm:$0xf]
  %v926 = vld [vmem:[%s918 + $0x1c] sm:$0xf]
  %v927 = vld [vmem:[%s918 + $0x20] sm:$0xf]
  %v928 = vld [vmem:[%s918 + $0x24] sm:$0xf]
  %v929 = vld [vmem:[%s918 + $0x28] sm:$0xf]
  %v930 = vld [vmem:[%s918 + $0x2c] sm:$0xf]
  %v931 = vld [vmem:[%s918 + $0x30] sm:$0xf]
  %v932 = vld [vmem:[%s918 + $0x34] sm:$0xf]
  %v933 = vld [vmem:[%s918 + $0x38] sm:$0xf]
  %v934 = vld [vmem:[%s918 + $0x3c] sm:$0xf]
  %s935 = scalar_lea.vmem %s5, 1
  %v936 = vld [vmem:[%s935] sm:$0x1]
  %v938 = vperm.slane %v936, 0
  %v956 = vunpack.c.l.b16 %v919
  %v957 = vunpack.c.l.b16 %v920
  %v958 = vunpack.c.l.b16 %v921
  %v959 = vunpack.c.l.b16 %v922
  %v960 = vunpack.c.l.b16 %v923
  %v961 = vunpack.c.l.b16 %v924
  %v962 = vunpack.c.l.b16 %v925
  %v963 = vunpack.c.l.b16 %v926
  %v964 = vunpack.c.l.b16 %v927
  %v965 = vunpack.c.l.b16 %v928
  %v966 = vunpack.c.l.b16 %v929
  %v967 = vunpack.c.l.b16 %v930
  %v968 = vunpack.c.l.b16 %v931
  %v969 = vunpack.c.l.b16 %v932
  %v970 = vunpack.c.l.b16 %v933
  %v971 = vunpack.c.l.b16 %v934
  %v972 = vpack.c.b16 %v957, %v956
  %v973 = vpack.c.b16 %v959, %v958
  %v974 = vpack.c.b16 %v961, %v960
  %v975 = vpack.c.b16 %v963, %v962
  %v976 = vpack.c.b16 %v965, %v964
  %v977 = vpack.c.b16 %v967, %v966
  %v978 = vpack.c.b16 %v969, %v968
  %v979 = vpack.c.b16 %v971, %v970
  %988 = vmatpush.bf16.msra.mxu0 %v979
  %989 = vmatpush.bf16.msra.mxu0 %v978
  %990 = vmatpush.bf16.msra.mxu0 %v977
  %991 = vmatpush.bf16.msra.mxu0 %v976
  %992 = vmatpush.bf16.msra.mxu0 %v975
  %993 = vmatpush.bf16.msra.mxu0 %v974
  %994 = vmatpush.bf16.msra.mxu0 %v973
  %995 = vmatpush.bf16.msra.mxu0 %v972
  %996 = vmatmul.bf16.gmra.mxu0 %v910
  %v997 = vpop.f32.mrf.mxu0
  %v998 = vadd.f32 %v938, %v997
  %v999 = vpop.f32.mrf.mxu0
  %v1000 = vadd.f32 %v938, %v999
  %1001 = vmatmul.bf16.gmra.mxu0 %v911
  %v1002 = vpop.f32.mrf.mxu0
  %v1003 = vadd.f32 %v938, %v1002
  %v1004 = vpop.f32.mrf.mxu0
  %v1005 = vadd.f32 %v938, %v1004
  %1006 = vmatmul.bf16.gmra.mxu0 %v912
  %v1007 = vpop.f32.mrf.mxu0
  %v1008 = vadd.f32 %v938, %v1007
  %v1009 = vpop.f32.mrf.mxu0
  %v1010 = vadd.f32 %v938, %v1009
  %1011 = vmatmul.bf16.gmra.mxu0 %v913
  %v1012 = vpop.f32.mrf.mxu0
  %v1013 = vadd.f32 %v938, %v1012
  %v1014 = vpop.f32.mrf.mxu0
  %v1015 = vadd.f32 %v938, %v1014
  %1016 = vmatmul.bf16.gmra.mxu0 %v914
  %v1017 = vpop.f32.mrf.mxu0
  %v1018 = vadd.f32 %v938, %v1017
  %v1019 = vpop.f32.mrf.mxu0
  %v1020 = vadd.f32 %v938, %v1019
  %1021 = vmatmul.bf16.gmra.mxu0 %v915
  %v1022 = vpop.f32.mrf.mxu0
  %v1023 = vadd.f32 %v938, %v1022
  %v1024 = vpop.f32.mrf.mxu0
  %v1025 = vadd.f32 %v938, %v1024
  %1026 = vmatmul.bf16.gmra.mxu0 %v916
  %v1027 = vpop.f32.mrf.mxu0
  %v1028 = vadd.f32 %v938, %v1027
  %v1029 = vpop.f32.mrf.mxu0
  %v1030 = vadd.f32 %v938, %v1029
  %1031 = vmatmul.bf16.gmra.mxu0 %v917
  %v1032 = vpop.f32.mrf.mxu0
  %v1033 = vadd.f32 %v938, %v1032
  %v1034 = vpop.f32.mrf.mxu0
  %v1035 = vadd.f32 %v938, %v1034
  %1036 = vdwg.mxu0
  %vm1037 = vcmp.gt.f32.partialorder %v998, 0.0
  %vm1038 = vcmp.gt.f32.partialorder %v1000, 0.0
  %vm1039 = vcmp.gt.f32.partialorder %v1003, 0.0
  %vm1040 = vcmp.gt.f32.partialorder %v1005, 0.0
  %vm1041 = vcmp.gt.f32.partialorder %v1008, 0.0
  %vm1042 = vcmp.gt.f32.partialorder %v1010, 0.0
  %vm1043 = vcmp.gt.f32.partialorder %v1013, 0.0
  %vm1044 = vcmp.gt.f32.partialorder %v1015, 0.0
  %vm1045 = vcmp.gt.f32.partialorder %v1018, 0.0
  %vm1046 = vcmp.gt.f32.partialorder %v1020, 0.0
  %vm1047 = vcmp.gt.f32.partialorder %v1023, 0.0
  %vm1048 = vcmp.gt.f32.partialorder %v1025, 0.0
  %vm1049 = vcmp.gt.f32.partialorder %v1028, 0.0
  %vm1050 = vcmp.gt.f32.partialorder %v1030, 0.0
  %vm1051 = vcmp.gt.f32.partialorder %v1033, 0.0
  %vm1052 = vcmp.gt.f32.partialorder %v1035, 0.0
  %v1053 = vmul.f32 %v998, 0.25
  %v1054 = vmul.f32 %v1000, 0.25
  %v1055 = vmul.f32 %v1003, 0.25
  %v1056 = vmul.f32 %v1005, 0.25
  %v1057 = vmul.f32 %v1008, 0.25
  %v1058 = vmul.f32 %v1010, 0.25
  %v1059 = vmul.f32 %v1013, 0.25
  %v1060 = vmul.f32 %v1015, 0.25
  %v1061 = vmul.f32 %v1018, 0.25
  %v1062 = vmul.f32 %v1020, 0.25
  %v1063 = vmul.f32 %v1023, 0.25
  %v1064 = vmul.f32 %v1025, 0.25
  %v1065 = vmul.f32 %v1028, 0.25
  %v1066 = vmul.f32 %v1030, 0.25
  %v1067 = vmul.f32 %v1033, 0.25
  %v1068 = vmul.f32 %v1035, 0.25
  %v1069 = vsel %vm1037, %v998, %v1053
  %v1070 = vsel %vm1038, %v1000, %v1054
  %v1071 = vsel %vm1039, %v1003, %v1055
  %v1072 = vsel %vm1040, %v1005, %v1056
  %v1073 = vsel %vm1041, %v1008, %v1057
  %v1074 = vsel %vm1042, %v1010, %v1058
  %v1075 = vsel %vm1043, %v1013, %v1059
  %v1076 = vsel %vm1044, %v1015, %v1060
  %v1077 = vsel %vm1045, %v1018, %v1061
  %v1078 = vsel %vm1046, %v1020, %v1062
  %v1079 = vsel %vm1047, %v1023, %v1063
  %v1080 = vsel %vm1048, %v1025, %v1064
  %v1081 = vsel %vm1049, %v1028, %v1065
  %v1082 = vsel %vm1050, %v1030, %v1066
  %v1083 = vsel %vm1051, %v1033, %v1067
  %v1084 = vsel %vm1052, %v1035, %v1068
  %s1085 = scalar_lea.vmem %s6, 64
  %v1086 = vld [vmem:[%s1085] sm:$0xf]
  %v1087 = vld [vmem:[%s1085 + $0x4] sm:$0xf]
  %v1088 = vld [vmem:[%s1085 + $0x8] sm:$0xf]
  %v1089 = vld [vmem:[%s1085 + $0xc] sm:$0xf]
  %v1090 = vld [vmem:[%s1085 + $0x10] sm:$0xf]
  %v1091 = vld [vmem:[%s1085 + $0x14] sm:$0xf]
  %v1092 = vld [vmem:[%s1085 + $0x18] sm:$0xf]
  %v1093 = vld [vmem:[%s1085 + $0x1c] sm:$0xf]
  %v1094 = vld [vmem:[%s1085 + $0x20] sm:$0xf]
  %v1095 = vld [vmem:[%s1085 + $0x24] sm:$0xf]
  %v1096 = vld [vmem:[%s1085 + $0x28] sm:$0xf]
  %v1097 = vld [vmem:[%s1085 + $0x2c] sm:$0xf]
  %v1098 = vld [vmem:[%s1085 + $0x30] sm:$0xf]
  %v1099 = vld [vmem:[%s1085 + $0x34] sm:$0xf]
  %v1100 = vld [vmem:[%s1085 + $0x38] sm:$0xf]
  %v1101 = vld [vmem:[%s1085 + $0x3c] sm:$0xf]
  %v1118 = vunpack.c.l.b16 %v1086
  %v1119 = vunpack.c.l.b16 %v1087
  %v1120 = vunpack.c.l.b16 %v1088
  %v1121 = vunpack.c.l.b16 %v1089
  %v1122 = vunpack.c.l.b16 %v1090
  %v1123 = vunpack.c.l.b16 %v1091
  %v1124 = vunpack.c.l.b16 %v1092
  %v1125 = vunpack.c.l.b16 %v1093
  %v1126 = vunpack.c.l.b16 %v1094
  %v1127 = vunpack.c.l.b16 %v1095
  %v1128 = vunpack.c.l.b16 %v1096
  %v1129 = vunpack.c.l.b16 %v1097
  %v1130 = vunpack.c.l.b16 %v1098
  %v1131 = vunpack.c.l.b16 %v1099
  %v1132 = vunpack.c.l.b16 %v1100
  %v1133 = vunpack.c.l.b16 %v1101
  %v1134 = vpack.c.b16 %v1119, %v1118
  %v1135 = vpack.c.b16 %v1121, %v1120
  %v1136 = vpack.c.b16 %v1123, %v1122
  %v1137 = vpack.c.b16 %v1125, %v1124
  %v1138 = vpack.c.b16 %v1127, %v1126
  %v1139 = vpack.c.b16 %v1129, %v1128
  %v1140 = vpack.c.b16 %v1131, %v1130
  %v1141 = vpack.c.b16 %v1133, %v1132
  %1150 = vmatpush.bf16.msra.mxu0 %v1141
  %1151 = vmatpush.bf16.msra.mxu0 %v1140
  %1152 = vmatpush.bf16.msra.mxu0 %v1139
  %1153 = vmatpush.bf16.msra.mxu0 %v1138
  %1154 = vmatpush.bf16.msra.mxu0 %v1137
  %1155 = vmatpush.bf16.msra.mxu0 %v1136
  %1156 = vmatpush.bf16.msra.mxu0 %v1135
  %1157 = vmatpush.bf16.msra.mxu0 %v1134
  %1158 = vmatmul.bf16.gmra.mxu0 %v678
  %v1159 = vpop.f32.mrf.mxu0
  %v1160 = vadd.f32 0.0, %v1159
  %v1161 = vpop.f32.mrf.mxu0
  %v1162 = vadd.f32 0.0, %v1161
  %1163 = vmatmul.bf16.gmra.mxu0 %v679
  %v1164 = vpop.f32.mrf.mxu0
  %v1165 = vadd.f32 0.0, %v1164
  %v1166 = vpop.f32.mrf.mxu0
  %v1167 = vadd.f32 0.0, %v1166
  %1168 = vmatmul.bf16.gmra.mxu0 %v680
  %v1169 = vpop.f32.mrf.mxu0
  %v1170 = vadd.f32 0.0, %v1169
  %v1171 = vpop.f32.mrf.mxu0
  %v1172 = vadd.f32 0.0, %v1171
  %1173 = vmatmul.bf16.gmra.mxu0 %v681
  %v1174 = vpop.f32.mrf.mxu0
  %v1175 = vadd.f32 0.0, %v1174
  %v1176 = vpop.f32.mrf.mxu0
  %v1177 = vadd.f32 0.0, %v1176
  %1178 = vmatmul.bf16.gmra.mxu0 %v682
  %v1179 = vpop.f32.mrf.mxu0
  %v1180 = vadd.f32 0.0, %v1179
  %v1181 = vpop.f32.mrf.mxu0
  %v1182 = vadd.f32 0.0, %v1181
  %1183 = vmatmul.bf16.gmra.mxu0 %v683
  %v1184 = vpop.f32.mrf.mxu0
  %v1185 = vadd.f32 0.0, %v1184
  %v1186 = vpop.f32.mrf.mxu0
  %v1187 = vadd.f32 0.0, %v1186
  %1188 = vmatmul.bf16.gmra.mxu0 %v684
  %v1189 = vpop.f32.mrf.mxu0
  %v1190 = vadd.f32 0.0, %v1189
  %v1191 = vpop.f32.mrf.mxu0
  %v1192 = vadd.f32 0.0, %v1191
  %1193 = vmatmul.bf16.gmra.mxu0 %v685
  %v1194 = vpop.f32.mrf.mxu0
  %v1195 = vadd.f32 0.0, %v1194
  %v1196 = vpop.f32.mrf.mxu0
  %v1197 = vadd.f32 0.0, %v1196
  %1198 = vdwg.mxu0
  %v1199 = vadd.f32 %v1069, %v1160
  %v1200 = vadd.f32 %v1070, %v1162
  %v1201 = vadd.f32 %v1071, %v1165
  %v1202 = vadd.f32 %v1072, %v1167
  %v1203 = vadd.f32 %v1073, %v1170
  %v1204 = vadd.f32 %v1074, %v1172
  %v1205 = vadd.f32 %v1075, %v1175
  %v1206 = vadd.f32 %v1076, %v1177
  %v1207 = vadd.f32 %v1077, %v1180
  %v1208 = vadd.f32 %v1078, %v1182
  %v1209 = vadd.f32 %v1079, %v1185
  %v1210 = vadd.f32 %v1080, %v1187
  %v1211 = vadd.f32 %v1081, %v1190
  %v1212 = vadd.f32 %v1082, %v1192
  %v1213 = vadd.f32 %v1083, %v1195
  %v1214 = vadd.f32 %v1084, %v1197
  %v1215 = vpack.c.bf16 %v1200, %v1199
  %v1216 = vpack.c.bf16 %v1202, %v1201
  %v1217 = vpack.c.bf16 %v1204, %v1203
  %v1218 = vpack.c.bf16 %v1206, %v1205
  %v1219 = vpack.c.bf16 %v1208, %v1207
  %v1220 = vpack.c.bf16 %v1210, %v1209
  %v1221 = vpack.c.bf16 %v1212, %v1211
  %v1222 = vpack.c.bf16 %v1214, %v1213
  %1223 = vmatpush.bf16.msra.mxu0 %v1222
  %1224 = vmatpush.bf16.msra.mxu0 %v1221
  %1225 = vmatpush.bf16.msra.mxu0 %v1220
  %1226 = vmatpush.bf16.msra.mxu0 %v1219
  %1227 = vmatpush.bf16.msra.mxu0 %v1218
  %1228 = vmatpush.bf16.msra.mxu0 %v1217
  %1229 = vmatpush.bf16.msra.mxu0 %v1216
  %1230 = vmatpush.bf16.msra.mxu0 %v1215
  %1231 = vmatmul.bf16.gmra.mxu0 %v90
  %v1232 = vpop.f32.mrf.mxu0
  %v1233 = vadd.f32 0.0, %v1232
  %v1234 = vpop.f32.mrf.mxu0
  %v1235 = vadd.f32 0.0, %v1234
  %1236 = vmatmul.bf16.gmra.mxu0 %v91
  %v1237 = vpop.f32.mrf.mxu0
  %v1238 = vadd.f32 0.0, %v1237
  %v1239 = vpop.f32.mrf.mxu0
  %v1240 = vadd.f32 0.0, %v1239
  %1241 = vmatmul.bf16.gmra.mxu0 %v92
  %v1242 = vpop.f32.mrf.mxu0
  %v1243 = vadd.f32 0.0, %v1242
  %v1244 = vpop.f32.mrf.mxu0
  %v1245 = vadd.f32 0.0, %v1244
  %1246 = vmatmul.bf16.gmra.mxu0 %v93
  %v1247 = vpop.f32.mrf.mxu0
  %v1248 = vadd.f32 0.0, %v1247
  %v1249 = vpop.f32.mrf.mxu0
  %v1250 = vadd.f32 0.0, %v1249
  %1251 = vmatmul.bf16.gmra.mxu0 %v94
  %v1252 = vpop.f32.mrf.mxu0
  %v1253 = vadd.f32 0.0, %v1252
  %v1254 = vpop.f32.mrf.mxu0
  %v1255 = vadd.f32 0.0, %v1254
  %1256 = vmatmul.bf16.gmra.mxu0 %v95
  %v1257 = vpop.f32.mrf.mxu0
  %v1258 = vadd.f32 0.0, %v1257
  %v1259 = vpop.f32.mrf.mxu0
  %v1260 = vadd.f32 0.0, %v1259
  %1261 = vmatmul.bf16.gmra.mxu0 %v96
  %v1262 = vpop.f32.mrf.mxu0
  %v1263 = vadd.f32 0.0, %v1262
  %v1264 = vpop.f32.mrf.mxu0
  %v1265 = vadd.f32 0.0, %v1264
  %1266 = vmatmul.bf16.gmra.mxu0 %v97
  %v1267 = vpop.f32.mrf.mxu0
  %v1268 = vadd.f32 0.0, %v1267
  %v1269 = vpop.f32.mrf.mxu0
  %v1270 = vadd.f32 0.0, %v1269
  %1271 = vdwg.mxu0
  %v1272 = vpack.c.bf16 %v1235, %v1233
  %v1273 = vpack.c.bf16 %v1240, %v1238
  %v1274 = vpack.c.bf16 %v1245, %v1243
  %v1275 = vpack.c.bf16 %v1250, %v1248
  %v1276 = vpack.c.bf16 %v1255, %v1253
  %v1277 = vpack.c.bf16 %v1260, %v1258
  %v1278 = vpack.c.bf16 %v1265, %v1263
  %v1279 = vpack.c.bf16 %v1270, %v1268
  %s1280 = scalar_lea.vmem %s2, 128
  %v1281 = vld [vmem:[%s1280] sm:$0xf]
  %v1282 = vld [vmem:[%s1280 + $0x4] sm:$0xf]
  %v1283 = vld [vmem:[%s1280 + $0x8] sm:$0xf]
  %v1284 = vld [vmem:[%s1280 + $0xc] sm:$0xf]
  %v1285 = vld [vmem:[%s1280 + $0x10] sm:$0xf]
  %v1286 = vld [vmem:[%s1280 + $0x14] sm:$0xf]
  %v1287 = vld [vmem:[%s1280 + $0x18] sm:$0xf]
  %v1288 = vld [vmem:[%s1280 + $0x1c] sm:$0xf]
  %v1289 = vld [vmem:[%s1280 + $0x20] sm:$0xf]
  %v1290 = vld [vmem:[%s1280 + $0x24] sm:$0xf]
  %v1291 = vld [vmem:[%s1280 + $0x28] sm:$0xf]
  %v1292 = vld [vmem:[%s1280 + $0x2c] sm:$0xf]
  %v1293 = vld [vmem:[%s1280 + $0x30] sm:$0xf]
  %v1294 = vld [vmem:[%s1280 + $0x34] sm:$0xf]
  %v1295 = vld [vmem:[%s1280 + $0x38] sm:$0xf]
  %v1296 = vld [vmem:[%s1280 + $0x3c] sm:$0xf]
  %s1297 = scalar_lea.vmem %s3, 2
  %v1298 = vld [vmem:[%s1297] sm:$0x1]
  %v1300 = vperm.slane %v1298, 0
  %v1318 = vunpack.c.l.b16 %v1281
  %v1319 = vunpack.c.l.b16 %v1282
  %v1320 = vunpack.c.l.b16 %v1283
  %v1321 = vunpack.c.l.b16 %v1284
  %v1322 = vunpack.c.l.b16 %v1285
  %v1323 = vunpack.c.l.b16 %v1286
  %v1324 = vunpack.c.l.b16 %v1287
  %v1325 = vunpack.c.l.b16 %v1288
  %v1326 = vunpack.c.l.b16 %v1289
  %v1327 = vunpack.c.l.b16 %v1290
  %v1328 = vunpack.c.l.b16 %v1291
  %v1329 = vunpack.c.l.b16 %v1292
  %v1330 = vunpack.c.l.b16 %v1293
  %v1331 = vunpack.c.l.b16 %v1294
  %v1332 = vunpack.c.l.b16 %v1295
  %v1333 = vunpack.c.l.b16 %v1296
  %v1334 = vpack.c.b16 %v1319, %v1318
  %v1335 = vpack.c.b16 %v1321, %v1320
  %v1336 = vpack.c.b16 %v1323, %v1322
  %v1337 = vpack.c.b16 %v1325, %v1324
  %v1338 = vpack.c.b16 %v1327, %v1326
  %v1339 = vpack.c.b16 %v1329, %v1328
  %v1340 = vpack.c.b16 %v1331, %v1330
  %v1341 = vpack.c.b16 %v1333, %v1332
  %1350 = vmatpush.bf16.msra.mxu0 %v1341
  %1351 = vmatpush.bf16.msra.mxu0 %v1340
  %1352 = vmatpush.bf16.msra.mxu0 %v1339
  %1353 = vmatpush.bf16.msra.mxu0 %v1338
  %1354 = vmatpush.bf16.msra.mxu0 %v1337
  %1355 = vmatpush.bf16.msra.mxu0 %v1336
  %1356 = vmatpush.bf16.msra.mxu0 %v1335
  %1357 = vmatpush.bf16.msra.mxu0 %v1334
  %1358 = vmatmul.bf16.gmra.mxu0 %v1272
  %v1359 = vpop.f32.mrf.mxu0
  %v1360 = vadd.f32 %v1300, %v1359
  %v1361 = vpop.f32.mrf.mxu0
  %v1362 = vadd.f32 %v1300, %v1361
  %1363 = vmatmul.bf16.gmra.mxu0 %v1273
  %v1364 = vpop.f32.mrf.mxu0
  %v1365 = vadd.f32 %v1300, %v1364
  %v1366 = vpop.f32.mrf.mxu0
  %v1367 = vadd.f32 %v1300, %v1366
  %1368 = vmatmul.bf16.gmra.mxu0 %v1274
  %v1369 = vpop.f32.mrf.mxu0
  %v1370 = vadd.f32 %v1300, %v1369
  %v1371 = vpop.f32.mrf.mxu0
  %v1372 = vadd.f32 %v1300, %v1371
  %1373 = vmatmul.bf16.gmra.mxu0 %v1275
  %v1374 = vpop.f32.mrf.mxu0
  %v1375 = vadd.f32 %v1300, %v1374
  %v1376 = vpop.f32.mrf.mxu0
  %v1377 = vadd.f32 %v1300, %v1376
  %1378 = vmatmul.bf16.gmra.mxu0 %v1276
  %v1379 = vpop.f32.mrf.mxu0
  %v1380 = vadd.f32 %v1300, %v1379
  %v1381 = vpop.f32.mrf.mxu0
  %v1382 = vadd.f32 %v1300, %v1381
  %1383 = vmatmul.bf16.gmra.mxu0 %v1277
  %v1384 = vpop.f32.mrf.mxu0
  %v1385 = vadd.f32 %v1300, %v1384
  %v1386 = vpop.f32.mrf.mxu0
  %v1387 = vadd.f32 %v1300, %v1386
  %1388 = vmatmul.bf16.gmra.mxu0 %v1278
  %v1389 = vpop.f32.mrf.mxu0
  %v1390 = vadd.f32 %v1300, %v1389
  %v1391 = vpop.f32.mrf.mxu0
  %v1392 = vadd.f32 %v1300, %v1391
  %1393 = vmatmul.bf16.gmra.mxu0 %v1279
  %v1394 = vpop.f32.mrf.mxu0
  %v1395 = vadd.f32 %v1300, %v1394
  %v1396 = vpop.f32.mrf.mxu0
  %v1397 = vadd.f32 %v1300, %v1396
  %1398 = vdwg.mxu0
  %vm1399 = vcmp.gt.f32.partialorder %v1360, 0.0
  %vm1400 = vcmp.gt.f32.partialorder %v1362, 0.0
  %vm1401 = vcmp.gt.f32.partialorder %v1365, 0.0
  %vm1402 = vcmp.gt.f32.partialorder %v1367, 0.0
  %vm1403 = vcmp.gt.f32.partialorder %v1370, 0.0
  %vm1404 = vcmp.gt.f32.partialorder %v1372, 0.0
  %vm1405 = vcmp.gt.f32.partialorder %v1375, 0.0
  %vm1406 = vcmp.gt.f32.partialorder %v1377, 0.0
  %vm1407 = vcmp.gt.f32.partialorder %v1380, 0.0
  %vm1408 = vcmp.gt.f32.partialorder %v1382, 0.0
  %vm1409 = vcmp.gt.f32.partialorder %v1385, 0.0
  %vm1410 = vcmp.gt.f32.partialorder %v1387, 0.0
  %vm1411 = vcmp.gt.f32.partialorder %v1390, 0.0
  %vm1412 = vcmp.gt.f32.partialorder %v1392, 0.0
  %vm1413 = vcmp.gt.f32.partialorder %v1395, 0.0
  %vm1414 = vcmp.gt.f32.partialorder %v1397, 0.0
  %v1415 = vmul.f32 %v1360, 0.25
  %v1416 = vmul.f32 %v1362, 0.25
  %v1417 = vmul.f32 %v1365, 0.25
  %v1418 = vmul.f32 %v1367, 0.25
  %v1419 = vmul.f32 %v1370, 0.25
  %v1420 = vmul.f32 %v1372, 0.25
  %v1421 = vmul.f32 %v1375, 0.25
  %v1422 = vmul.f32 %v1377, 0.25
  %v1423 = vmul.f32 %v1380, 0.25
  %v1424 = vmul.f32 %v1382, 0.25
  %v1425 = vmul.f32 %v1385, 0.25
  %v1426 = vmul.f32 %v1387, 0.25
  %v1427 = vmul.f32 %v1390, 0.25
  %v1428 = vmul.f32 %v1392, 0.25
  %v1429 = vmul.f32 %v1395, 0.25
  %v1430 = vmul.f32 %v1397, 0.25
  %v1431 = vsel %vm1399, %v1360, %v1415
  %v1432 = vsel %vm1400, %v1362, %v1416
  %v1433 = vsel %vm1401, %v1365, %v1417
  %v1434 = vsel %vm1402, %v1367, %v1418
  %v1435 = vsel %vm1403, %v1370, %v1419
  %v1436 = vsel %vm1404, %v1372, %v1420
  %v1437 = vsel %vm1405, %v1375, %v1421
  %v1438 = vsel %vm1406, %v1377, %v1422
  %v1439 = vsel %vm1407, %v1380, %v1423
  %v1440 = vsel %vm1408, %v1382, %v1424
  %v1441 = vsel %vm1409, %v1385, %v1425
  %v1442 = vsel %vm1410, %v1387, %v1426
  %v1443 = vsel %vm1411, %v1390, %v1427
  %v1444 = vsel %vm1412, %v1392, %v1428
  %v1445 = vsel %vm1413, %v1395, %v1429
  %v1446 = vsel %vm1414, %v1397, %v1430
  %v1447 = vpack.c.bf16 %v1432, %v1431
  %v1448 = vpack.c.bf16 %v1434, %v1433
  %v1449 = vpack.c.bf16 %v1436, %v1435
  %v1450 = vpack.c.bf16 %v1438, %v1437
  %v1451 = vpack.c.bf16 %v1440, %v1439
  %v1452 = vpack.c.bf16 %v1442, %v1441
  %v1453 = vpack.c.bf16 %v1444, %v1443
  %v1454 = vpack.c.bf16 %v1446, %v1445
  %s1455 = scalar_lea.vmem %s4, 128
  %v1456 = vld [vmem:[%s1455] sm:$0xf]
  %v1457 = vld [vmem:[%s1455 + $0x4] sm:$0xf]
  %v1458 = vld [vmem:[%s1455 + $0x8] sm:$0xf]
  %v1459 = vld [vmem:[%s1455 + $0xc] sm:$0xf]
  %v1460 = vld [vmem:[%s1455 + $0x10] sm:$0xf]
  %v1461 = vld [vmem:[%s1455 + $0x14] sm:$0xf]
  %v1462 = vld [vmem:[%s1455 + $0x18] sm:$0xf]
  %v1463 = vld [vmem:[%s1455 + $0x1c] sm:$0xf]
  %v1464 = vld [vmem:[%s1455 + $0x20] sm:$0xf]
  %v1465 = vld [vmem:[%s1455 + $0x24] sm:$0xf]
  %v1466 = vld [vmem:[%s1455 + $0x28] sm:$0xf]
  %v1467 = vld [vmem:[%s1455 + $0x2c] sm:$0xf]
  %v1468 = vld [vmem:[%s1455 + $0x30] sm:$0xf]
  %v1469 = vld [vmem:[%s1455 + $0x34] sm:$0xf]
  %v1470 = vld [vmem:[%s1455 + $0x38] sm:$0xf]
  %v1471 = vld [vmem:[%s1455 + $0x3c] sm:$0xf]
  %s1472 = scalar_lea.vmem %s5, 2
  %v1473 = vld [vmem:[%s1472] sm:$0x1]
  %v1475 = vperm.slane %v1473, 0
  %v1493 = vunpack.c.l.b16 %v1456
  %v1494 = vunpack.c.l.b16 %v1457
  %v1495 = vunpack.c.l.b16 %v1458
  %v1496 = vunpack.c.l.b16 %v1459
  %v1497 = vunpack.c.l.b16 %v1460
  %v1498 = vunpack.c.l.b16 %v1461
  %v1499 = vunpack.c.l.b16 %v1462
  %v1500 = vunpack.c.l.b16 %v1463
  %v1501 = vunpack.c.l.b16 %v1464
  %v1502 = vunpack.c.l.b16 %v1465
  %v1503 = vunpack.c.l.b16 %v1466
  %v1504 = vunpack.c.l.b16 %v1467
  %v1505 = vunpack.c.l.b16 %v1468
  %v1506 = vunpack.c.l.b16 %v1469
  %v1507 = vunpack.c.l.b16 %v1470
  %v1508 = vunpack.c.l.b16 %v1471
  %v1509 = vpack.c.b16 %v1494, %v1493
  %v1510 = vpack.c.b16 %v1496, %v1495
  %v1511 = vpack.c.b16 %v1498, %v1497
  %v1512 = vpack.c.b16 %v1500, %v1499
  %v1513 = vpack.c.b16 %v1502, %v1501
  %v1514 = vpack.c.b16 %v1504, %v1503
  %v1515 = vpack.c.b16 %v1506, %v1505
  %v1516 = vpack.c.b16 %v1508, %v1507
  %1525 = vmatpush.bf16.msra.mxu0 %v1516
  %1526 = vmatpush.bf16.msra.mxu0 %v1515
  %1527 = vmatpush.bf16.msra.mxu0 %v1514
  %1528 = vmatpush.bf16.msra.mxu0 %v1513
  %1529 = vmatpush.bf16.msra.mxu0 %v1512
  %1530 = vmatpush.bf16.msra.mxu0 %v1511
  %1531 = vmatpush.bf16.msra.mxu0 %v1510
  %1532 = vmatpush.bf16.msra.mxu0 %v1509
  %1533 = vmatmul.bf16.gmra.mxu0 %v1447
  %v1534 = vpop.f32.mrf.mxu0
  %v1535 = vadd.f32 %v1475, %v1534
  %v1536 = vpop.f32.mrf.mxu0
  %v1537 = vadd.f32 %v1475, %v1536
  %1538 = vmatmul.bf16.gmra.mxu0 %v1448
  %v1539 = vpop.f32.mrf.mxu0
  %v1540 = vadd.f32 %v1475, %v1539
  %v1541 = vpop.f32.mrf.mxu0
  %v1542 = vadd.f32 %v1475, %v1541
  %1543 = vmatmul.bf16.gmra.mxu0 %v1449
  %v1544 = vpop.f32.mrf.mxu0
  %v1545 = vadd.f32 %v1475, %v1544
  %v1546 = vpop.f32.mrf.mxu0
  %v1547 = vadd.f32 %v1475, %v1546
  %1548 = vmatmul.bf16.gmra.mxu0 %v1450
  %v1549 = vpop.f32.mrf.mxu0
  %v1550 = vadd.f32 %v1475, %v1549
  %v1551 = vpop.f32.mrf.mxu0
  %v1552 = vadd.f32 %v1475, %v1551
  %1553 = vmatmul.bf16.gmra.mxu0 %v1451
  %v1554 = vpop.f32.mrf.mxu0
  %v1555 = vadd.f32 %v1475, %v1554
  %v1556 = vpop.f32.mrf.mxu0
  %v1557 = vadd.f32 %v1475, %v1556
  %1558 = vmatmul.bf16.gmra.mxu0 %v1452
  %v1559 = vpop.f32.mrf.mxu0
  %v1560 = vadd.f32 %v1475, %v1559
  %v1561 = vpop.f32.mrf.mxu0
  %v1562 = vadd.f32 %v1475, %v1561
  %1563 = vmatmul.bf16.gmra.mxu0 %v1453
  %v1564 = vpop.f32.mrf.mxu0
  %v1565 = vadd.f32 %v1475, %v1564
  %v1566 = vpop.f32.mrf.mxu0
  %v1567 = vadd.f32 %v1475, %v1566
  %1568 = vmatmul.bf16.gmra.mxu0 %v1454
  %v1569 = vpop.f32.mrf.mxu0
  %v1570 = vadd.f32 %v1475, %v1569
  %v1571 = vpop.f32.mrf.mxu0
  %v1572 = vadd.f32 %v1475, %v1571
  %1573 = vdwg.mxu0
  %vm1574 = vcmp.gt.f32.partialorder %v1535, 0.0
  %vm1575 = vcmp.gt.f32.partialorder %v1537, 0.0
  %vm1576 = vcmp.gt.f32.partialorder %v1540, 0.0
  %vm1577 = vcmp.gt.f32.partialorder %v1542, 0.0
  %vm1578 = vcmp.gt.f32.partialorder %v1545, 0.0
  %vm1579 = vcmp.gt.f32.partialorder %v1547, 0.0
  %vm1580 = vcmp.gt.f32.partialorder %v1550, 0.0
  %vm1581 = vcmp.gt.f32.partialorder %v1552, 0.0
  %vm1582 = vcmp.gt.f32.partialorder %v1555, 0.0
  %vm1583 = vcmp.gt.f32.partialorder %v1557, 0.0
  %vm1584 = vcmp.gt.f32.partialorder %v1560, 0.0
  %vm1585 = vcmp.gt.f32.partialorder %v1562, 0.0
  %vm1586 = vcmp.gt.f32.partialorder %v1565, 0.0
  %vm1587 = vcmp.gt.f32.partialorder %v1567, 0.0
  %vm1588 = vcmp.gt.f32.partialorder %v1570, 0.0
  %vm1589 = vcmp.gt.f32.partialorder %v1572, 0.0
  %v1590 = vmul.f32 %v1535, 0.25
  %v1591 = vmul.f32 %v1537, 0.25
  %v1592 = vmul.f32 %v1540, 0.25
  %v1593 = vmul.f32 %v1542, 0.25
  %v1594 = vmul.f32 %v1545, 0.25
  %v1595 = vmul.f32 %v1547, 0.25
  %v1596 = vmul.f32 %v1550, 0.25
  %v1597 = vmul.f32 %v1552, 0.25
  %v1598 = vmul.f32 %v1555, 0.25
  %v1599 = vmul.f32 %v1557, 0.25
  %v1600 = vmul.f32 %v1560, 0.25
  %v1601 = vmul.f32 %v1562, 0.25
  %v1602 = vmul.f32 %v1565, 0.25
  %v1603 = vmul.f32 %v1567, 0.25
  %v1604 = vmul.f32 %v1570, 0.25
  %v1605 = vmul.f32 %v1572, 0.25
  %v1606 = vsel %vm1574, %v1535, %v1590
  %v1607 = vsel %vm1575, %v1537, %v1591
  %v1608 = vsel %vm1576, %v1540, %v1592
  %v1609 = vsel %vm1577, %v1542, %v1593
  %v1610 = vsel %vm1578, %v1545, %v1594
  %v1611 = vsel %vm1579, %v1547, %v1595
  %v1612 = vsel %vm1580, %v1550, %v1596
  %v1613 = vsel %vm1581, %v1552, %v1597
  %v1614 = vsel %vm1582, %v1555, %v1598
  %v1615 = vsel %vm1583, %v1557, %v1599
  %v1616 = vsel %vm1584, %v1560, %v1600
  %v1617 = vsel %vm1585, %v1562, %v1601
  %v1618 = vsel %vm1586, %v1565, %v1602
  %v1619 = vsel %vm1587, %v1567, %v1603
  %v1620 = vsel %vm1588, %v1570, %v1604
  %v1621 = vsel %vm1589, %v1572, %v1605
  %s1622 = scalar_lea.vmem %s6, 128
  %v1623 = vld [vmem:[%s1622] sm:$0xf]
  %v1624 = vld [vmem:[%s1622 + $0x4] sm:$0xf]
  %v1625 = vld [vmem:[%s1622 + $0x8] sm:$0xf]
  %v1626 = vld [vmem:[%s1622 + $0xc] sm:$0xf]
  %v1627 = vld [vmem:[%s1622 + $0x10] sm:$0xf]
  %v1628 = vld [vmem:[%s1622 + $0x14] sm:$0xf]
  %v1629 = vld [vmem:[%s1622 + $0x18] sm:$0xf]
  %v1630 = vld [vmem:[%s1622 + $0x1c] sm:$0xf]
  %v1631 = vld [vmem:[%s1622 + $0x20] sm:$0xf]
  %v1632 = vld [vmem:[%s1622 + $0x24] sm:$0xf]
  %v1633 = vld [vmem:[%s1622 + $0x28] sm:$0xf]
  %v1634 = vld [vmem:[%s1622 + $0x2c] sm:$0xf]
  %v1635 = vld [vmem:[%s1622 + $0x30] sm:$0xf]
  %v1636 = vld [vmem:[%s1622 + $0x34] sm:$0xf]
  %v1637 = vld [vmem:[%s1622 + $0x38] sm:$0xf]
  %v1638 = vld [vmem:[%s1622 + $0x3c] sm:$0xf]
  %v1655 = vunpack.c.l.b16 %v1623
  %v1656 = vunpack.c.l.b16 %v1624
  %v1657 = vunpack.c.l.b16 %v1625
  %v1658 = vunpack.c.l.b16 %v1626
  %v1659 = vunpack.c.l.b16 %v1627
  %v1660 = vunpack.c.l.b16 %v1628
  %v1661 = vunpack.c.l.b16 %v1629
  %v1662 = vunpack.c.l.b16 %v1630
  %v1663 = vunpack.c.l.b16 %v1631
  %v1664 = vunpack.c.l.b16 %v1632
  %v1665 = vunpack.c.l.b16 %v1633
  %v1666 = vunpack.c.l.b16 %v1634
  %v1667 = vunpack.c.l.b16 %v1635
  %v1668 = vunpack.c.l.b16 %v1636
  %v1669 = vunpack.c.l.b16 %v1637
  %v1670 = vunpack.c.l.b16 %v1638
  %v1671 = vpack.c.b16 %v1656, %v1655
  %v1672 = vpack.c.b16 %v1658, %v1657
  %v1673 = vpack.c.b16 %v1660, %v1659
  %v1674 = vpack.c.b16 %v1662, %v1661
  %v1675 = vpack.c.b16 %v1664, %v1663
  %v1676 = vpack.c.b16 %v1666, %v1665
  %v1677 = vpack.c.b16 %v1668, %v1667
  %v1678 = vpack.c.b16 %v1670, %v1669
  %1687 = vmatpush.bf16.msra.mxu0 %v1678
  %1688 = vmatpush.bf16.msra.mxu0 %v1677
  %1689 = vmatpush.bf16.msra.mxu0 %v1676
  %1690 = vmatpush.bf16.msra.mxu0 %v1675
  %1691 = vmatpush.bf16.msra.mxu0 %v1674
  %1692 = vmatpush.bf16.msra.mxu0 %v1673
  %1693 = vmatpush.bf16.msra.mxu0 %v1672
  %1694 = vmatpush.bf16.msra.mxu0 %v1671
  %1695 = vmatmul.bf16.gmra.mxu0 %v1215
  %v1696 = vpop.f32.mrf.mxu0
  %v1697 = vadd.f32 0.0, %v1696
  %v1698 = vpop.f32.mrf.mxu0
  %v1699 = vadd.f32 0.0, %v1698
  %1700 = vmatmul.bf16.gmra.mxu0 %v1216
  %v1701 = vpop.f32.mrf.mxu0
  %v1702 = vadd.f32 0.0, %v1701
  %v1703 = vpop.f32.mrf.mxu0
  %v1704 = vadd.f32 0.0, %v1703
  %1705 = vmatmul.bf16.gmra.mxu0 %v1217
  %v1706 = vpop.f32.mrf.mxu0
  %v1707 = vadd.f32 0.0, %v1706
  %v1708 = vpop.f32.mrf.mxu0
  %v1709 = vadd.f32 0.0, %v1708
  %1710 = vmatmul.bf16.gmra.mxu0 %v1218
  %v1711 = vpop.f32.mrf.mxu0
  %v1712 = vadd.f32 0.0, %v1711
  %v1713 = vpop.f32.mrf.mxu0
  %v1714 = vadd.f32 0.0, %v1713
  %1715 = vmatmul.bf16.gmra.mxu0 %v1219
  %v1716 = vpop.f32.mrf.mxu0
  %v1717 = vadd.f32 0.0, %v1716
  %v1718 = vpop.f32.mrf.mxu0
  %v1719 = vadd.f32 0.0, %v1718
  %1720 = vmatmul.bf16.gmra.mxu0 %v1220
  %v1721 = vpop.f32.mrf.mxu0
  %v1722 = vadd.f32 0.0, %v1721
  %v1723 = vpop.f32.mrf.mxu0
  %v1724 = vadd.f32 0.0, %v1723
  %1725 = vmatmul.bf16.gmra.mxu0 %v1221
  %v1726 = vpop.f32.mrf.mxu0
  %v1727 = vadd.f32 0.0, %v1726
  %v1728 = vpop.f32.mrf.mxu0
  %v1729 = vadd.f32 0.0, %v1728
  %1730 = vmatmul.bf16.gmra.mxu0 %v1222
  %v1731 = vpop.f32.mrf.mxu0
  %v1732 = vadd.f32 0.0, %v1731
  %v1733 = vpop.f32.mrf.mxu0
  %v1734 = vadd.f32 0.0, %v1733
  %1735 = vdwg.mxu0
  %v1736 = vadd.f32 %v1606, %v1697
  %v1737 = vadd.f32 %v1607, %v1699
  %v1738 = vadd.f32 %v1608, %v1702
  %v1739 = vadd.f32 %v1609, %v1704
  %v1740 = vadd.f32 %v1610, %v1707
  %v1741 = vadd.f32 %v1611, %v1709
  %v1742 = vadd.f32 %v1612, %v1712
  %v1743 = vadd.f32 %v1613, %v1714
  %v1744 = vadd.f32 %v1614, %v1717
  %v1745 = vadd.f32 %v1615, %v1719
  %v1746 = vadd.f32 %v1616, %v1722
  %v1747 = vadd.f32 %v1617, %v1724
  %v1748 = vadd.f32 %v1618, %v1727
  %v1749 = vadd.f32 %v1619, %v1729
  %v1750 = vadd.f32 %v1620, %v1732
  %v1751 = vadd.f32 %v1621, %v1734
  %v1752 = vpack.c.bf16 %v1737, %v1736
  %v1753 = vpack.c.bf16 %v1739, %v1738
  %v1754 = vpack.c.bf16 %v1741, %v1740
  %v1755 = vpack.c.bf16 %v1743, %v1742
  %v1756 = vpack.c.bf16 %v1745, %v1744
  %v1757 = vpack.c.bf16 %v1747, %v1746
  %v1758 = vpack.c.bf16 %v1749, %v1748
  %v1759 = vpack.c.bf16 %v1751, %v1750
  %1760 = vmatpush.bf16.msra.mxu0 %v1759
  %1761 = vmatpush.bf16.msra.mxu0 %v1758
  %1762 = vmatpush.bf16.msra.mxu0 %v1757
  %1763 = vmatpush.bf16.msra.mxu0 %v1756
  %1764 = vmatpush.bf16.msra.mxu0 %v1755
  %1765 = vmatpush.bf16.msra.mxu0 %v1754
  %1766 = vmatpush.bf16.msra.mxu0 %v1753
  %1767 = vmatpush.bf16.msra.mxu0 %v1752
  %1768 = vmatmul.bf16.gmra.mxu0 %v90
  %v1769 = vpop.f32.mrf.mxu0
  %v1770 = vadd.f32 0.0, %v1769
  %v1771 = vpop.f32.mrf.mxu0
  %v1772 = vadd.f32 0.0, %v1771
  %1773 = vmatmul.bf16.gmra.mxu0 %v91
  %v1774 = vpop.f32.mrf.mxu0
  %v1775 = vadd.f32 0.0, %v1774
  %v1776 = vpop.f32.mrf.mxu0
  %v1777 = vadd.f32 0.0, %v1776
  %1778 = vmatmul.bf16.gmra.mxu0 %v92
  %v1779 = vpop.f32.mrf.mxu0
  %v1780 = vadd.f32 0.0, %v1779
  %v1781 = vpop.f32.mrf.mxu0
  %v1782 = vadd.f32 0.0, %v1781
  %1783 = vmatmul.bf16.gmra.mxu0 %v93
  %v1784 = vpop.f32.mrf.mxu0
  %v1785 = vadd.f32 0.0, %v1784
  %v1786 = vpop.f32.mrf.mxu0
  %v1787 = vadd.f32 0.0, %v1786
  %1788 = vmatmul.bf16.gmra.mxu0 %v94
  %v1789 = vpop.f32.mrf.mxu0
  %v1790 = vadd.f32 0.0, %v1789
  %v1791 = vpop.f32.mrf.mxu0
  %v1792 = vadd.f32 0.0, %v1791
  %1793 = vmatmul.bf16.gmra.mxu0 %v95
  %v1794 = vpop.f32.mrf.mxu0
  %v1795 = vadd.f32 0.0, %v1794
  %v1796 = vpop.f32.mrf.mxu0
  %v1797 = vadd.f32 0.0, %v1796
  %1798 = vmatmul.bf16.gmra.mxu0 %v96
  %v1799 = vpop.f32.mrf.mxu0
  %v1800 = vadd.f32 0.0, %v1799
  %v1801 = vpop.f32.mrf.mxu0
  %v1802 = vadd.f32 0.0, %v1801
  %1803 = vmatmul.bf16.gmra.mxu0 %v97
  %v1804 = vpop.f32.mrf.mxu0
  %v1805 = vadd.f32 0.0, %v1804
  %v1806 = vpop.f32.mrf.mxu0
  %v1807 = vadd.f32 0.0, %v1806
  %1808 = vdwg.mxu0
  %v1809 = vpack.c.bf16 %v1772, %v1770
  %v1810 = vpack.c.bf16 %v1777, %v1775
  %v1811 = vpack.c.bf16 %v1782, %v1780
  %v1812 = vpack.c.bf16 %v1787, %v1785
  %v1813 = vpack.c.bf16 %v1792, %v1790
  %v1814 = vpack.c.bf16 %v1797, %v1795
  %v1815 = vpack.c.bf16 %v1802, %v1800
  %v1816 = vpack.c.bf16 %v1807, %v1805
  %s1817 = scalar_lea.vmem %s2, 192
  %v1818 = vld [vmem:[%s1817] sm:$0xf]
  %v1819 = vld [vmem:[%s1817 + $0x4] sm:$0xf]
  %v1820 = vld [vmem:[%s1817 + $0x8] sm:$0xf]
  %v1821 = vld [vmem:[%s1817 + $0xc] sm:$0xf]
  %v1822 = vld [vmem:[%s1817 + $0x10] sm:$0xf]
  %v1823 = vld [vmem:[%s1817 + $0x14] sm:$0xf]
  %v1824 = vld [vmem:[%s1817 + $0x18] sm:$0xf]
  %v1825 = vld [vmem:[%s1817 + $0x1c] sm:$0xf]
  %v1826 = vld [vmem:[%s1817 + $0x20] sm:$0xf]
  %v1827 = vld [vmem:[%s1817 + $0x24] sm:$0xf]
  %v1828 = vld [vmem:[%s1817 + $0x28] sm:$0xf]
  %v1829 = vld [vmem:[%s1817 + $0x2c] sm:$0xf]
  %v1830 = vld [vmem:[%s1817 + $0x30] sm:$0xf]
  %v1831 = vld [vmem:[%s1817 + $0x34] sm:$0xf]
  %v1832 = vld [vmem:[%s1817 + $0x38] sm:$0xf]
  %v1833 = vld [vmem:[%s1817 + $0x3c] sm:$0xf]
  %s1834 = scalar_lea.vmem %s3, 3
  %v1835 = vld [vmem:[%s1834] sm:$0x1]
  %v1837 = vperm.slane %v1835, 0
  %v1855 = vunpack.c.l.b16 %v1818
  %v1856 = vunpack.c.l.b16 %v1819
  %v1857 = vunpack.c.l.b16 %v1820
  %v1858 = vunpack.c.l.b16 %v1821
  %v1859 = vunpack.c.l.b16 %v1822
  %v1860 = vunpack.c.l.b16 %v1823
  %v1861 = vunpack.c.l.b16 %v1824
  %v1862 = vunpack.c.l.b16 %v1825
  %v1863 = vunpack.c.l.b16 %v1826
  %v1864 = vunpack.c.l.b16 %v1827
  %v1865 = vunpack.c.l.b16 %v1828
  %v1866 = vunpack.c.l.b16 %v1829
  %v1867 = vunpack.c.l.b16 %v1830
  %v1868 = vunpack.c.l.b16 %v1831
  %v1869 = vunpack.c.l.b16 %v1832
  %v1870 = vunpack.c.l.b16 %v1833
  %v1871 = vpack.c.b16 %v1856, %v1855
  %v1872 = vpack.c.b16 %v1858, %v1857
  %v1873 = vpack.c.b16 %v1860, %v1859
  %v1874 = vpack.c.b16 %v1862, %v1861
  %v1875 = vpack.c.b16 %v1864, %v1863
  %v1876 = vpack.c.b16 %v1866, %v1865
  %v1877 = vpack.c.b16 %v1868, %v1867
  %v1878 = vpack.c.b16 %v1870, %v1869
  %1887 = vmatpush.bf16.msra.mxu0 %v1878
  %1888 = vmatpush.bf16.msra.mxu0 %v1877
  %1889 = vmatpush.bf16.msra.mxu0 %v1876
  %1890 = vmatpush.bf16.msra.mxu0 %v1875
  %1891 = vmatpush.bf16.msra.mxu0 %v1874
  %1892 = vmatpush.bf16.msra.mxu0 %v1873
  %1893 = vmatpush.bf16.msra.mxu0 %v1872
  %1894 = vmatpush.bf16.msra.mxu0 %v1871
  %1895 = vmatmul.bf16.gmra.mxu0 %v1809
  %v1896 = vpop.f32.mrf.mxu0
  %v1897 = vadd.f32 %v1837, %v1896
  %v1898 = vpop.f32.mrf.mxu0
  %v1899 = vadd.f32 %v1837, %v1898
  %1900 = vmatmul.bf16.gmra.mxu0 %v1810
  %v1901 = vpop.f32.mrf.mxu0
  %v1902 = vadd.f32 %v1837, %v1901
  %v1903 = vpop.f32.mrf.mxu0
  %v1904 = vadd.f32 %v1837, %v1903
  %1905 = vmatmul.bf16.gmra.mxu0 %v1811
  %v1906 = vpop.f32.mrf.mxu0
  %v1907 = vadd.f32 %v1837, %v1906
  %v1908 = vpop.f32.mrf.mxu0
  %v1909 = vadd.f32 %v1837, %v1908
  %1910 = vmatmul.bf16.gmra.mxu0 %v1812
  %v1911 = vpop.f32.mrf.mxu0
  %v1912 = vadd.f32 %v1837, %v1911
  %v1913 = vpop.f32.mrf.mxu0
  %v1914 = vadd.f32 %v1837, %v1913
  %1915 = vmatmul.bf16.gmra.mxu0 %v1813
  %v1916 = vpop.f32.mrf.mxu0
  %v1917 = vadd.f32 %v1837, %v1916
  %v1918 = vpop.f32.mrf.mxu0
  %v1919 = vadd.f32 %v1837, %v1918
  %1920 = vmatmul.bf16.gmra.mxu0 %v1814
  %v1921 = vpop.f32.mrf.mxu0
  %v1922 = vadd.f32 %v1837, %v1921
  %v1923 = vpop.f32.mrf.mxu0
  %v1924 = vadd.f32 %v1837, %v1923
  %1925 = vmatmul.bf16.gmra.mxu0 %v1815
  %v1926 = vpop.f32.mrf.mxu0
  %v1927 = vadd.f32 %v1837, %v1926
  %v1928 = vpop.f32.mrf.mxu0
  %v1929 = vadd.f32 %v1837, %v1928
  %1930 = vmatmul.bf16.gmra.mxu0 %v1816
  %v1931 = vpop.f32.mrf.mxu0
  %v1932 = vadd.f32 %v1837, %v1931
  %v1933 = vpop.f32.mrf.mxu0
  %v1934 = vadd.f32 %v1837, %v1933
  %1935 = vdwg.mxu0
  %vm1936 = vcmp.gt.f32.partialorder %v1897, 0.0
  %vm1937 = vcmp.gt.f32.partialorder %v1899, 0.0
  %vm1938 = vcmp.gt.f32.partialorder %v1902, 0.0
  %vm1939 = vcmp.gt.f32.partialorder %v1904, 0.0
  %vm1940 = vcmp.gt.f32.partialorder %v1907, 0.0
  %vm1941 = vcmp.gt.f32.partialorder %v1909, 0.0
  %vm1942 = vcmp.gt.f32.partialorder %v1912, 0.0
  %vm1943 = vcmp.gt.f32.partialorder %v1914, 0.0
  %vm1944 = vcmp.gt.f32.partialorder %v1917, 0.0
  %vm1945 = vcmp.gt.f32.partialorder %v1919, 0.0
  %vm1946 = vcmp.gt.f32.partialorder %v1922, 0.0
  %vm1947 = vcmp.gt.f32.partialorder %v1924, 0.0
  %vm1948 = vcmp.gt.f32.partialorder %v1927, 0.0
  %vm1949 = vcmp.gt.f32.partialorder %v1929, 0.0
  %vm1950 = vcmp.gt.f32.partialorder %v1932, 0.0
  %vm1951 = vcmp.gt.f32.partialorder %v1934, 0.0
  %v1952 = vmul.f32 %v1897, 0.25
  %v1953 = vmul.f32 %v1899, 0.25
  %v1954 = vmul.f32 %v1902, 0.25
  %v1955 = vmul.f32 %v1904, 0.25
  %v1956 = vmul.f32 %v1907, 0.25
  %v1957 = vmul.f32 %v1909, 0.25
  %v1958 = vmul.f32 %v1912, 0.25
  %v1959 = vmul.f32 %v1914, 0.25
  %v1960 = vmul.f32 %v1917, 0.25
  %v1961 = vmul.f32 %v1919, 0.25
  %v1962 = vmul.f32 %v1922, 0.25
  %v1963 = vmul.f32 %v1924, 0.25
  %v1964 = vmul.f32 %v1927, 0.25
  %v1965 = vmul.f32 %v1929, 0.25
  %v1966 = vmul.f32 %v1932, 0.25
  %v1967 = vmul.f32 %v1934, 0.25
  %v1968 = vsel %vm1936, %v1897, %v1952
  %v1969 = vsel %vm1937, %v1899, %v1953
  %v1970 = vsel %vm1938, %v1902, %v1954
  %v1971 = vsel %vm1939, %v1904, %v1955
  %v1972 = vsel %vm1940, %v1907, %v1956
  %v1973 = vsel %vm1941, %v1909, %v1957
  %v1974 = vsel %vm1942, %v1912, %v1958
  %v1975 = vsel %vm1943, %v1914, %v1959
  %v1976 = vsel %vm1944, %v1917, %v1960
  %v1977 = vsel %vm1945, %v1919, %v1961
  %v1978 = vsel %vm1946, %v1922, %v1962
  %v1979 = vsel %vm1947, %v1924, %v1963
  %v1980 = vsel %vm1948, %v1927, %v1964
  %v1981 = vsel %vm1949, %v1929, %v1965
  %v1982 = vsel %vm1950, %v1932, %v1966
  %v1983 = vsel %vm1951, %v1934, %v1967
  %v1984 = vpack.c.bf16 %v1969, %v1968
  %v1985 = vpack.c.bf16 %v1971, %v1970
  %v1986 = vpack.c.bf16 %v1973, %v1972
  %v1987 = vpack.c.bf16 %v1975, %v1974
  %v1988 = vpack.c.bf16 %v1977, %v1976
  %v1989 = vpack.c.bf16 %v1979, %v1978
  %v1990 = vpack.c.bf16 %v1981, %v1980
  %v1991 = vpack.c.bf16 %v1983, %v1982
  %s1992 = scalar_lea.vmem %s4, 192
  %v1993 = vld [vmem:[%s1992] sm:$0xf]
  %v1994 = vld [vmem:[%s1992 + $0x4] sm:$0xf]
  %v1995 = vld [vmem:[%s1992 + $0x8] sm:$0xf]
  %v1996 = vld [vmem:[%s1992 + $0xc] sm:$0xf]
  %v1997 = vld [vmem:[%s1992 + $0x10] sm:$0xf]
  %v1998 = vld [vmem:[%s1992 + $0x14] sm:$0xf]
  %v1999 = vld [vmem:[%s1992 + $0x18] sm:$0xf]
  %v2000 = vld [vmem:[%s1992 + $0x1c] sm:$0xf]
  %v2001 = vld [vmem:[%s1992 + $0x20] sm:$0xf]
  %v2002 = vld [vmem:[%s1992 + $0x24] sm:$0xf]
  %v2003 = vld [vmem:[%s1992 + $0x28] sm:$0xf]
  %v2004 = vld [vmem:[%s1992 + $0x2c] sm:$0xf]
  %v2005 = vld [vmem:[%s1992 + $0x30] sm:$0xf]
  %v2006 = vld [vmem:[%s1992 + $0x34] sm:$0xf]
  %v2007 = vld [vmem:[%s1992 + $0x38] sm:$0xf]
  %v2008 = vld [vmem:[%s1992 + $0x3c] sm:$0xf]
  %s2009 = scalar_lea.vmem %s5, 3
  %v2010 = vld [vmem:[%s2009] sm:$0x1]
  %v2012 = vperm.slane %v2010, 0
  %v2030 = vunpack.c.l.b16 %v1993
  %v2031 = vunpack.c.l.b16 %v1994
  %v2032 = vunpack.c.l.b16 %v1995
  %v2033 = vunpack.c.l.b16 %v1996
  %v2034 = vunpack.c.l.b16 %v1997
  %v2035 = vunpack.c.l.b16 %v1998
  %v2036 = vunpack.c.l.b16 %v1999
  %v2037 = vunpack.c.l.b16 %v2000
  %v2038 = vunpack.c.l.b16 %v2001
  %v2039 = vunpack.c.l.b16 %v2002
  %v2040 = vunpack.c.l.b16 %v2003
  %v2041 = vunpack.c.l.b16 %v2004
  %v2042 = vunpack.c.l.b16 %v2005
  %v2043 = vunpack.c.l.b16 %v2006
  %v2044 = vunpack.c.l.b16 %v2007
  %v2045 = vunpack.c.l.b16 %v2008
  %v2046 = vpack.c.b16 %v2031, %v2030
  %v2047 = vpack.c.b16 %v2033, %v2032
  %v2048 = vpack.c.b16 %v2035, %v2034
  %v2049 = vpack.c.b16 %v2037, %v2036
  %v2050 = vpack.c.b16 %v2039, %v2038
  %v2051 = vpack.c.b16 %v2041, %v2040
  %v2052 = vpack.c.b16 %v2043, %v2042
  %v2053 = vpack.c.b16 %v2045, %v2044
  %2062 = vmatpush.bf16.msra.mxu0 %v2053
  %2063 = vmatpush.bf16.msra.mxu0 %v2052
  %2064 = vmatpush.bf16.msra.mxu0 %v2051
  %2065 = vmatpush.bf16.msra.mxu0 %v2050
  %2066 = vmatpush.bf16.msra.mxu0 %v2049
  %2067 = vmatpush.bf16.msra.mxu0 %v2048
  %2068 = vmatpush.bf16.msra.mxu0 %v2047
  %2069 = vmatpush.bf16.msra.mxu0 %v2046
  %2070 = vmatmul.bf16.gmra.mxu0 %v1984
  %v2071 = vpop.f32.mrf.mxu0
  %v2072 = vadd.f32 %v2012, %v2071
  %v2073 = vpop.f32.mrf.mxu0
  %v2074 = vadd.f32 %v2012, %v2073
  %2075 = vmatmul.bf16.gmra.mxu0 %v1985
  %v2076 = vpop.f32.mrf.mxu0
  %v2077 = vadd.f32 %v2012, %v2076
  %v2078 = vpop.f32.mrf.mxu0
  %v2079 = vadd.f32 %v2012, %v2078
  %2080 = vmatmul.bf16.gmra.mxu0 %v1986
  %v2081 = vpop.f32.mrf.mxu0
  %v2082 = vadd.f32 %v2012, %v2081
  %v2083 = vpop.f32.mrf.mxu0
  %v2084 = vadd.f32 %v2012, %v2083
  %2085 = vmatmul.bf16.gmra.mxu0 %v1987
  %v2086 = vpop.f32.mrf.mxu0
  %v2087 = vadd.f32 %v2012, %v2086
  %v2088 = vpop.f32.mrf.mxu0
  %v2089 = vadd.f32 %v2012, %v2088
  %2090 = vmatmul.bf16.gmra.mxu0 %v1988
  %v2091 = vpop.f32.mrf.mxu0
  %v2092 = vadd.f32 %v2012, %v2091
  %v2093 = vpop.f32.mrf.mxu0
  %v2094 = vadd.f32 %v2012, %v2093
  %2095 = vmatmul.bf16.gmra.mxu0 %v1989
  %v2096 = vpop.f32.mrf.mxu0
  %v2097 = vadd.f32 %v2012, %v2096
  %v2098 = vpop.f32.mrf.mxu0
  %v2099 = vadd.f32 %v2012, %v2098
  %2100 = vmatmul.bf16.gmra.mxu0 %v1990
  %v2101 = vpop.f32.mrf.mxu0
  %v2102 = vadd.f32 %v2012, %v2101
  %v2103 = vpop.f32.mrf.mxu0
  %v2104 = vadd.f32 %v2012, %v2103
  %2105 = vmatmul.bf16.gmra.mxu0 %v1991
  %v2106 = vpop.f32.mrf.mxu0
  %v2107 = vadd.f32 %v2012, %v2106
  %v2108 = vpop.f32.mrf.mxu0
  %v2109 = vadd.f32 %v2012, %v2108
  %2110 = vdwg.mxu0
  %vm2111 = vcmp.gt.f32.partialorder %v2072, 0.0
  %vm2112 = vcmp.gt.f32.partialorder %v2074, 0.0
  %vm2113 = vcmp.gt.f32.partialorder %v2077, 0.0
  %vm2114 = vcmp.gt.f32.partialorder %v2079, 0.0
  %vm2115 = vcmp.gt.f32.partialorder %v2082, 0.0
  %vm2116 = vcmp.gt.f32.partialorder %v2084, 0.0
  %vm2117 = vcmp.gt.f32.partialorder %v2087, 0.0
  %vm2118 = vcmp.gt.f32.partialorder %v2089, 0.0
  %vm2119 = vcmp.gt.f32.partialorder %v2092, 0.0
  %vm2120 = vcmp.gt.f32.partialorder %v2094, 0.0
  %vm2121 = vcmp.gt.f32.partialorder %v2097, 0.0
  %vm2122 = vcmp.gt.f32.partialorder %v2099, 0.0
  %vm2123 = vcmp.gt.f32.partialorder %v2102, 0.0
  %vm2124 = vcmp.gt.f32.partialorder %v2104, 0.0
  %vm2125 = vcmp.gt.f32.partialorder %v2107, 0.0
  %vm2126 = vcmp.gt.f32.partialorder %v2109, 0.0
  %v2127 = vmul.f32 %v2072, 0.25
  %v2128 = vmul.f32 %v2074, 0.25
  %v2129 = vmul.f32 %v2077, 0.25
  %v2130 = vmul.f32 %v2079, 0.25
  %v2131 = vmul.f32 %v2082, 0.25
  %v2132 = vmul.f32 %v2084, 0.25
  %v2133 = vmul.f32 %v2087, 0.25
  %v2134 = vmul.f32 %v2089, 0.25
  %v2135 = vmul.f32 %v2092, 0.25
  %v2136 = vmul.f32 %v2094, 0.25
  %v2137 = vmul.f32 %v2097, 0.25
  %v2138 = vmul.f32 %v2099, 0.25
  %v2139 = vmul.f32 %v2102, 0.25
  %v2140 = vmul.f32 %v2104, 0.25
  %v2141 = vmul.f32 %v2107, 0.25
  %v2142 = vmul.f32 %v2109, 0.25
  %v2143 = vsel %vm2111, %v2072, %v2127
  %v2144 = vsel %vm2112, %v2074, %v2128
  %v2145 = vsel %vm2113, %v2077, %v2129
  %v2146 = vsel %vm2114, %v2079, %v2130
  %v2147 = vsel %vm2115, %v2082, %v2131
  %v2148 = vsel %vm2116, %v2084, %v2132
  %v2149 = vsel %vm2117, %v2087, %v2133
  %v2150 = vsel %vm2118, %v2089, %v2134
  %v2151 = vsel %vm2119, %v2092, %v2135
  %v2152 = vsel %vm2120, %v2094, %v2136
  %v2153 = vsel %vm2121, %v2097, %v2137
  %v2154 = vsel %vm2122, %v2099, %v2138
  %v2155 = vsel %vm2123, %v2102, %v2139
  %v2156 = vsel %vm2124, %v2104, %v2140
  %v2157 = vsel %vm2125, %v2107, %v2141
  %v2158 = vsel %vm2126, %v2109, %v2142
  %s2159 = scalar_lea.vmem %s6, 192
  %v2160 = vld [vmem:[%s2159] sm:$0xf]
  %v2161 = vld [vmem:[%s2159 + $0x4] sm:$0xf]
  %v2162 = vld [vmem:[%s2159 + $0x8] sm:$0xf]
  %v2163 = vld [vmem:[%s2159 + $0xc] sm:$0xf]
  %v2164 = vld [vmem:[%s2159 + $0x10] sm:$0xf]
  %v2165 = vld [vmem:[%s2159 + $0x14] sm:$0xf]
  %v2166 = vld [vmem:[%s2159 + $0x18] sm:$0xf]
  %v2167 = vld [vmem:[%s2159 + $0x1c] sm:$0xf]
  %v2168 = vld [vmem:[%s2159 + $0x20] sm:$0xf]
  %v2169 = vld [vmem:[%s2159 + $0x24] sm:$0xf]
  %v2170 = vld [vmem:[%s2159 + $0x28] sm:$0xf]
  %v2171 = vld [vmem:[%s2159 + $0x2c] sm:$0xf]
  %v2172 = vld [vmem:[%s2159 + $0x30] sm:$0xf]
  %v2173 = vld [vmem:[%s2159 + $0x34] sm:$0xf]
  %v2174 = vld [vmem:[%s2159 + $0x38] sm:$0xf]
  %v2175 = vld [vmem:[%s2159 + $0x3c] sm:$0xf]
  %v2192 = vunpack.c.l.b16 %v2160
  %v2193 = vunpack.c.l.b16 %v2161
  %v2194 = vunpack.c.l.b16 %v2162
  %v2195 = vunpack.c.l.b16 %v2163
  %v2196 = vunpack.c.l.b16 %v2164
  %v2197 = vunpack.c.l.b16 %v2165
  %v2198 = vunpack.c.l.b16 %v2166
  %v2199 = vunpack.c.l.b16 %v2167
  %v2200 = vunpack.c.l.b16 %v2168
  %v2201 = vunpack.c.l.b16 %v2169
  %v2202 = vunpack.c.l.b16 %v2170
  %v2203 = vunpack.c.l.b16 %v2171
  %v2204 = vunpack.c.l.b16 %v2172
  %v2205 = vunpack.c.l.b16 %v2173
  %v2206 = vunpack.c.l.b16 %v2174
  %v2207 = vunpack.c.l.b16 %v2175
  %v2208 = vpack.c.b16 %v2193, %v2192
  %v2209 = vpack.c.b16 %v2195, %v2194
  %v2210 = vpack.c.b16 %v2197, %v2196
  %v2211 = vpack.c.b16 %v2199, %v2198
  %v2212 = vpack.c.b16 %v2201, %v2200
  %v2213 = vpack.c.b16 %v2203, %v2202
  %v2214 = vpack.c.b16 %v2205, %v2204
  %v2215 = vpack.c.b16 %v2207, %v2206
  %2224 = vmatpush.bf16.msra.mxu0 %v2215
  %2225 = vmatpush.bf16.msra.mxu0 %v2214
  %2226 = vmatpush.bf16.msra.mxu0 %v2213
  %2227 = vmatpush.bf16.msra.mxu0 %v2212
  %2228 = vmatpush.bf16.msra.mxu0 %v2211
  %2229 = vmatpush.bf16.msra.mxu0 %v2210
  %2230 = vmatpush.bf16.msra.mxu0 %v2209
  %2231 = vmatpush.bf16.msra.mxu0 %v2208
  %2232 = vmatmul.bf16.gmra.mxu0 %v1752
  %v2233 = vpop.f32.mrf.mxu0
  %v2234 = vadd.f32 0.0, %v2233
  %v2235 = vpop.f32.mrf.mxu0
  %v2236 = vadd.f32 0.0, %v2235
  %2237 = vmatmul.bf16.gmra.mxu0 %v1753
  %v2238 = vpop.f32.mrf.mxu0
  %v2239 = vadd.f32 0.0, %v2238
  %v2240 = vpop.f32.mrf.mxu0
  %v2241 = vadd.f32 0.0, %v2240
  %2242 = vmatmul.bf16.gmra.mxu0 %v1754
  %v2243 = vpop.f32.mrf.mxu0
  %v2244 = vadd.f32 0.0, %v2243
  %v2245 = vpop.f32.mrf.mxu0
  %v2246 = vadd.f32 0.0, %v2245
  %2247 = vmatmul.bf16.gmra.mxu0 %v1755
  %v2248 = vpop.f32.mrf.mxu0
  %v2249 = vadd.f32 0.0, %v2248
  %v2250 = vpop.f32.mrf.mxu0
  %v2251 = vadd.f32 0.0, %v2250
  %2252 = vmatmul.bf16.gmra.mxu0 %v1756
  %v2253 = vpop.f32.mrf.mxu0
  %v2254 = vadd.f32 0.0, %v2253
  %v2255 = vpop.f32.mrf.mxu0
  %v2256 = vadd.f32 0.0, %v2255
  %2257 = vmatmul.bf16.gmra.mxu0 %v1757
  %v2258 = vpop.f32.mrf.mxu0
  %v2259 = vadd.f32 0.0, %v2258
  %v2260 = vpop.f32.mrf.mxu0
  %v2261 = vadd.f32 0.0, %v2260
  %2262 = vmatmul.bf16.gmra.mxu0 %v1758
  %v2263 = vpop.f32.mrf.mxu0
  %v2264 = vadd.f32 0.0, %v2263
  %v2265 = vpop.f32.mrf.mxu0
  %v2266 = vadd.f32 0.0, %v2265
  %2267 = vmatmul.bf16.gmra.mxu0 %v1759
  %v2268 = vpop.f32.mrf.mxu0
  %v2269 = vadd.f32 0.0, %v2268
  %v2270 = vpop.f32.mrf.mxu0
  %v2271 = vadd.f32 0.0, %v2270
  %2272 = vdwg.mxu0
  %v2273 = vadd.f32 %v2143, %v2234
  %v2274 = vadd.f32 %v2144, %v2236
  %v2275 = vadd.f32 %v2145, %v2239
  %v2276 = vadd.f32 %v2146, %v2241
  %v2277 = vadd.f32 %v2147, %v2244
  %v2278 = vadd.f32 %v2148, %v2246
  %v2279 = vadd.f32 %v2149, %v2249
  %v2280 = vadd.f32 %v2150, %v2251
  %v2281 = vadd.f32 %v2151, %v2254
  %v2282 = vadd.f32 %v2152, %v2256
  %v2283 = vadd.f32 %v2153, %v2259
  %v2284 = vadd.f32 %v2154, %v2261
  %v2285 = vadd.f32 %v2155, %v2264
  %v2286 = vadd.f32 %v2156, %v2266
  %v2287 = vadd.f32 %v2157, %v2269
  %v2288 = vadd.f32 %v2158, %v2271
  %v2289 = vpack.c.bf16 %v2274, %v2273
  %v2290 = vpack.c.bf16 %v2276, %v2275
  %v2291 = vpack.c.bf16 %v2278, %v2277
  %v2292 = vpack.c.bf16 %v2280, %v2279
  %v2293 = vpack.c.bf16 %v2282, %v2281
  %v2294 = vpack.c.bf16 %v2284, %v2283
  %v2295 = vpack.c.bf16 %v2286, %v2285
  %v2296 = vpack.c.bf16 %v2288, %v2287
  %2297 = vmatpush.bf16.msra.mxu0 %v2296
  %2298 = vmatpush.bf16.msra.mxu0 %v2295
  %2299 = vmatpush.bf16.msra.mxu0 %v2294
  %2300 = vmatpush.bf16.msra.mxu0 %v2293
  %2301 = vmatpush.bf16.msra.mxu0 %v2292
  %2302 = vmatpush.bf16.msra.mxu0 %v2291
  %2303 = vmatpush.bf16.msra.mxu0 %v2290
  %2304 = vmatpush.bf16.msra.mxu0 %v2289
  %2305 = vmatmul.bf16.gmra.mxu0 %v90
  %v2306 = vpop.f32.mrf.mxu0
  %v2307 = vadd.f32 0.0, %v2306
  %v2308 = vpop.f32.mrf.mxu0
  %v2309 = vadd.f32 0.0, %v2308
  %2310 = vmatmul.bf16.gmra.mxu0 %v91
  %v2311 = vpop.f32.mrf.mxu0
  %v2312 = vadd.f32 0.0, %v2311
  %v2313 = vpop.f32.mrf.mxu0
  %v2314 = vadd.f32 0.0, %v2313
  %2315 = vmatmul.bf16.gmra.mxu0 %v92
  %v2316 = vpop.f32.mrf.mxu0
  %v2317 = vadd.f32 0.0, %v2316
  %v2318 = vpop.f32.mrf.mxu0
  %v2319 = vadd.f32 0.0, %v2318
  %2320 = vmatmul.bf16.gmra.mxu0 %v93
  %v2321 = vpop.f32.mrf.mxu0
  %v2322 = vadd.f32 0.0, %v2321
  %v2323 = vpop.f32.mrf.mxu0
  %v2324 = vadd.f32 0.0, %v2323
  %2325 = vmatmul.bf16.gmra.mxu0 %v94
  %v2326 = vpop.f32.mrf.mxu0
  %v2327 = vadd.f32 0.0, %v2326
  %v2328 = vpop.f32.mrf.mxu0
  %v2329 = vadd.f32 0.0, %v2328
  %2330 = vmatmul.bf16.gmra.mxu0 %v95
  %v2331 = vpop.f32.mrf.mxu0
  %v2332 = vadd.f32 0.0, %v2331
  %v2333 = vpop.f32.mrf.mxu0
  %v2334 = vadd.f32 0.0, %v2333
  %2335 = vmatmul.bf16.gmra.mxu0 %v96
  %v2336 = vpop.f32.mrf.mxu0
  %v2337 = vadd.f32 0.0, %v2336
  %v2338 = vpop.f32.mrf.mxu0
  %v2339 = vadd.f32 0.0, %v2338
  %2340 = vmatmul.bf16.gmra.mxu0 %v97
  %v2341 = vpop.f32.mrf.mxu0
  %v2342 = vadd.f32 0.0, %v2341
  %v2343 = vpop.f32.mrf.mxu0
  %v2344 = vadd.f32 0.0, %v2343
  %2345 = vdwg.mxu0
  %v2346 = vpack.c.bf16 %v2309, %v2307
  %v2347 = vpack.c.bf16 %v2314, %v2312
  %v2348 = vpack.c.bf16 %v2319, %v2317
  %v2349 = vpack.c.bf16 %v2324, %v2322
  %v2350 = vpack.c.bf16 %v2329, %v2327
  %v2351 = vpack.c.bf16 %v2334, %v2332
  %v2352 = vpack.c.bf16 %v2339, %v2337
  %v2353 = vpack.c.bf16 %v2344, %v2342
  %s2354 = scalar_lea.vmem %s2, 256
  %v2355 = vld [vmem:[%s2354] sm:$0xf]
  %v2356 = vld [vmem:[%s2354 + $0x4] sm:$0xf]
  %v2357 = vld [vmem:[%s2354 + $0x8] sm:$0xf]
  %v2358 = vld [vmem:[%s2354 + $0xc] sm:$0xf]
  %v2359 = vld [vmem:[%s2354 + $0x10] sm:$0xf]
  %v2360 = vld [vmem:[%s2354 + $0x14] sm:$0xf]
  %v2361 = vld [vmem:[%s2354 + $0x18] sm:$0xf]
  %v2362 = vld [vmem:[%s2354 + $0x1c] sm:$0xf]
  %v2363 = vld [vmem:[%s2354 + $0x20] sm:$0xf]
  %v2364 = vld [vmem:[%s2354 + $0x24] sm:$0xf]
  %v2365 = vld [vmem:[%s2354 + $0x28] sm:$0xf]
  %v2366 = vld [vmem:[%s2354 + $0x2c] sm:$0xf]
  %v2367 = vld [vmem:[%s2354 + $0x30] sm:$0xf]
  %v2368 = vld [vmem:[%s2354 + $0x34] sm:$0xf]
  %v2369 = vld [vmem:[%s2354 + $0x38] sm:$0xf]
  %v2370 = vld [vmem:[%s2354 + $0x3c] sm:$0xf]
  %s2371 = scalar_lea.vmem %s3, 4
  %v2372 = vld [vmem:[%s2371] sm:$0x1]
  %v2374 = vperm.slane %v2372, 0
  %v2392 = vunpack.c.l.b16 %v2355
  %v2393 = vunpack.c.l.b16 %v2356
  %v2394 = vunpack.c.l.b16 %v2357
  %v2395 = vunpack.c.l.b16 %v2358
  %v2396 = vunpack.c.l.b16 %v2359
  %v2397 = vunpack.c.l.b16 %v2360
  %v2398 = vunpack.c.l.b16 %v2361
  %v2399 = vunpack.c.l.b16 %v2362
  %v2400 = vunpack.c.l.b16 %v2363
  %v2401 = vunpack.c.l.b16 %v2364
  %v2402 = vunpack.c.l.b16 %v2365
  %v2403 = vunpack.c.l.b16 %v2366
  %v2404 = vunpack.c.l.b16 %v2367
  %v2405 = vunpack.c.l.b16 %v2368
  %v2406 = vunpack.c.l.b16 %v2369
  %v2407 = vunpack.c.l.b16 %v2370
  %v2408 = vpack.c.b16 %v2393, %v2392
  %v2409 = vpack.c.b16 %v2395, %v2394
  %v2410 = vpack.c.b16 %v2397, %v2396
  %v2411 = vpack.c.b16 %v2399, %v2398
  %v2412 = vpack.c.b16 %v2401, %v2400
  %v2413 = vpack.c.b16 %v2403, %v2402
  %v2414 = vpack.c.b16 %v2405, %v2404
  %v2415 = vpack.c.b16 %v2407, %v2406
  %2424 = vmatpush.bf16.msra.mxu0 %v2415
  %2425 = vmatpush.bf16.msra.mxu0 %v2414
  %2426 = vmatpush.bf16.msra.mxu0 %v2413
  %2427 = vmatpush.bf16.msra.mxu0 %v2412
  %2428 = vmatpush.bf16.msra.mxu0 %v2411
  %2429 = vmatpush.bf16.msra.mxu0 %v2410
  %2430 = vmatpush.bf16.msra.mxu0 %v2409
  %2431 = vmatpush.bf16.msra.mxu0 %v2408
  %2432 = vmatmul.bf16.gmra.mxu0 %v2346
  %v2433 = vpop.f32.mrf.mxu0
  %v2434 = vadd.f32 %v2374, %v2433
  %v2435 = vpop.f32.mrf.mxu0
  %v2436 = vadd.f32 %v2374, %v2435
  %2437 = vmatmul.bf16.gmra.mxu0 %v2347
  %v2438 = vpop.f32.mrf.mxu0
  %v2439 = vadd.f32 %v2374, %v2438
  %v2440 = vpop.f32.mrf.mxu0
  %v2441 = vadd.f32 %v2374, %v2440
  %2442 = vmatmul.bf16.gmra.mxu0 %v2348
  %v2443 = vpop.f32.mrf.mxu0
  %v2444 = vadd.f32 %v2374, %v2443
  %v2445 = vpop.f32.mrf.mxu0
  %v2446 = vadd.f32 %v2374, %v2445
  %2447 = vmatmul.bf16.gmra.mxu0 %v2349
  %v2448 = vpop.f32.mrf.mxu0
  %v2449 = vadd.f32 %v2374, %v2448
  %v2450 = vpop.f32.mrf.mxu0
  %v2451 = vadd.f32 %v2374, %v2450
  %2452 = vmatmul.bf16.gmra.mxu0 %v2350
  %v2453 = vpop.f32.mrf.mxu0
  %v2454 = vadd.f32 %v2374, %v2453
  %v2455 = vpop.f32.mrf.mxu0
  %v2456 = vadd.f32 %v2374, %v2455
  %2457 = vmatmul.bf16.gmra.mxu0 %v2351
  %v2458 = vpop.f32.mrf.mxu0
  %v2459 = vadd.f32 %v2374, %v2458
  %v2460 = vpop.f32.mrf.mxu0
  %v2461 = vadd.f32 %v2374, %v2460
  %2462 = vmatmul.bf16.gmra.mxu0 %v2352
  %v2463 = vpop.f32.mrf.mxu0
  %v2464 = vadd.f32 %v2374, %v2463
  %v2465 = vpop.f32.mrf.mxu0
  %v2466 = vadd.f32 %v2374, %v2465
  %2467 = vmatmul.bf16.gmra.mxu0 %v2353
  %v2468 = vpop.f32.mrf.mxu0
  %v2469 = vadd.f32 %v2374, %v2468
  %v2470 = vpop.f32.mrf.mxu0
  %v2471 = vadd.f32 %v2374, %v2470
  %2472 = vdwg.mxu0
  %vm2473 = vcmp.gt.f32.partialorder %v2434, 0.0
  %vm2474 = vcmp.gt.f32.partialorder %v2436, 0.0
  %vm2475 = vcmp.gt.f32.partialorder %v2439, 0.0
  %vm2476 = vcmp.gt.f32.partialorder %v2441, 0.0
  %vm2477 = vcmp.gt.f32.partialorder %v2444, 0.0
  %vm2478 = vcmp.gt.f32.partialorder %v2446, 0.0
  %vm2479 = vcmp.gt.f32.partialorder %v2449, 0.0
  %vm2480 = vcmp.gt.f32.partialorder %v2451, 0.0
  %vm2481 = vcmp.gt.f32.partialorder %v2454, 0.0
  %vm2482 = vcmp.gt.f32.partialorder %v2456, 0.0
  %vm2483 = vcmp.gt.f32.partialorder %v2459, 0.0
  %vm2484 = vcmp.gt.f32.partialorder %v2461, 0.0
  %vm2485 = vcmp.gt.f32.partialorder %v2464, 0.0
  %vm2486 = vcmp.gt.f32.partialorder %v2466, 0.0
  %vm2487 = vcmp.gt.f32.partialorder %v2469, 0.0
  %vm2488 = vcmp.gt.f32.partialorder %v2471, 0.0
  %v2489 = vmul.f32 %v2434, 0.25
  %v2490 = vmul.f32 %v2436, 0.25
  %v2491 = vmul.f32 %v2439, 0.25
  %v2492 = vmul.f32 %v2441, 0.25
  %v2493 = vmul.f32 %v2444, 0.25
  %v2494 = vmul.f32 %v2446, 0.25
  %v2495 = vmul.f32 %v2449, 0.25
  %v2496 = vmul.f32 %v2451, 0.25
  %v2497 = vmul.f32 %v2454, 0.25
  %v2498 = vmul.f32 %v2456, 0.25
  %v2499 = vmul.f32 %v2459, 0.25
  %v2500 = vmul.f32 %v2461, 0.25
  %v2501 = vmul.f32 %v2464, 0.25
  %v2502 = vmul.f32 %v2466, 0.25
  %v2503 = vmul.f32 %v2469, 0.25
  %v2504 = vmul.f32 %v2471, 0.25
  %v2505 = vsel %vm2473, %v2434, %v2489
  %v2506 = vsel %vm2474, %v2436, %v2490
  %v2507 = vsel %vm2475, %v2439, %v2491
  %v2508 = vsel %vm2476, %v2441, %v2492
  %v2509 = vsel %vm2477, %v2444, %v2493
  %v2510 = vsel %vm2478, %v2446, %v2494
  %v2511 = vsel %vm2479, %v2449, %v2495
  %v2512 = vsel %vm2480, %v2451, %v2496
  %v2513 = vsel %vm2481, %v2454, %v2497
  %v2514 = vsel %vm2482, %v2456, %v2498
  %v2515 = vsel %vm2483, %v2459, %v2499
  %v2516 = vsel %vm2484, %v2461, %v2500
  %v2517 = vsel %vm2485, %v2464, %v2501
  %v2518 = vsel %vm2486, %v2466, %v2502
  %v2519 = vsel %vm2487, %v2469, %v2503
  %v2520 = vsel %vm2488, %v2471, %v2504
  %v2521 = vpack.c.bf16 %v2506, %v2505
  %v2522 = vpack.c.bf16 %v2508, %v2507
  %v2523 = vpack.c.bf16 %v2510, %v2509
  %v2524 = vpack.c.bf16 %v2512, %v2511
  %v2525 = vpack.c.bf16 %v2514, %v2513
  %v2526 = vpack.c.bf16 %v2516, %v2515
  %v2527 = vpack.c.bf16 %v2518, %v2517
  %v2528 = vpack.c.bf16 %v2520, %v2519
  %s2529 = scalar_lea.vmem %s4, 256
  %v2530 = vld [vmem:[%s2529] sm:$0xf]
  %v2531 = vld [vmem:[%s2529 + $0x4] sm:$0xf]
  %v2532 = vld [vmem:[%s2529 + $0x8] sm:$0xf]
  %v2533 = vld [vmem:[%s2529 + $0xc] sm:$0xf]
  %v2534 = vld [vmem:[%s2529 + $0x10] sm:$0xf]
  %v2535 = vld [vmem:[%s2529 + $0x14] sm:$0xf]
  %v2536 = vld [vmem:[%s2529 + $0x18] sm:$0xf]
  %v2537 = vld [vmem:[%s2529 + $0x1c] sm:$0xf]
  %v2538 = vld [vmem:[%s2529 + $0x20] sm:$0xf]
  %v2539 = vld [vmem:[%s2529 + $0x24] sm:$0xf]
  %v2540 = vld [vmem:[%s2529 + $0x28] sm:$0xf]
  %v2541 = vld [vmem:[%s2529 + $0x2c] sm:$0xf]
  %v2542 = vld [vmem:[%s2529 + $0x30] sm:$0xf]
  %v2543 = vld [vmem:[%s2529 + $0x34] sm:$0xf]
  %v2544 = vld [vmem:[%s2529 + $0x38] sm:$0xf]
  %v2545 = vld [vmem:[%s2529 + $0x3c] sm:$0xf]
  %s2546 = scalar_lea.vmem %s5, 4
  %v2547 = vld [vmem:[%s2546] sm:$0x1]
  %v2549 = vperm.slane %v2547, 0
  %v2567 = vunpack.c.l.b16 %v2530
  %v2568 = vunpack.c.l.b16 %v2531
  %v2569 = vunpack.c.l.b16 %v2532
  %v2570 = vunpack.c.l.b16 %v2533
  %v2571 = vunpack.c.l.b16 %v2534
  %v2572 = vunpack.c.l.b16 %v2535
  %v2573 = vunpack.c.l.b16 %v2536
  %v2574 = vunpack.c.l.b16 %v2537
  %v2575 = vunpack.c.l.b16 %v2538
  %v2576 = vunpack.c.l.b16 %v2539
  %v2577 = vunpack.c.l.b16 %v2540
  %v2578 = vunpack.c.l.b16 %v2541
  %v2579 = vunpack.c.l.b16 %v2542
  %v2580 = vunpack.c.l.b16 %v2543
  %v2581 = vunpack.c.l.b16 %v2544
  %v2582 = vunpack.c.l.b16 %v2545
  %v2583 = vpack.c.b16 %v2568, %v2567
  %v2584 = vpack.c.b16 %v2570, %v2569
  %v2585 = vpack.c.b16 %v2572, %v2571
  %v2586 = vpack.c.b16 %v2574, %v2573
  %v2587 = vpack.c.b16 %v2576, %v2575
  %v2588 = vpack.c.b16 %v2578, %v2577
  %v2589 = vpack.c.b16 %v2580, %v2579
  %v2590 = vpack.c.b16 %v2582, %v2581
  %2599 = vmatpush.bf16.msra.mxu0 %v2590
  %2600 = vmatpush.bf16.msra.mxu0 %v2589
  %2601 = vmatpush.bf16.msra.mxu0 %v2588
  %2602 = vmatpush.bf16.msra.mxu0 %v2587
  %2603 = vmatpush.bf16.msra.mxu0 %v2586
  %2604 = vmatpush.bf16.msra.mxu0 %v2585
  %2605 = vmatpush.bf16.msra.mxu0 %v2584
  %2606 = vmatpush.bf16.msra.mxu0 %v2583
  %2607 = vmatmul.bf16.gmra.mxu0 %v2521
  %v2608 = vpop.f32.mrf.mxu0
  %v2609 = vadd.f32 %v2549, %v2608
  %v2610 = vpop.f32.mrf.mxu0
  %v2611 = vadd.f32 %v2549, %v2610
  %2612 = vmatmul.bf16.gmra.mxu0 %v2522
  %v2613 = vpop.f32.mrf.mxu0
  %v2614 = vadd.f32 %v2549, %v2613
  %v2615 = vpop.f32.mrf.mxu0
  %v2616 = vadd.f32 %v2549, %v2615
  %2617 = vmatmul.bf16.gmra.mxu0 %v2523
  %v2618 = vpop.f32.mrf.mxu0
  %v2619 = vadd.f32 %v2549, %v2618
  %v2620 = vpop.f32.mrf.mxu0
  %v2621 = vadd.f32 %v2549, %v2620
  %2622 = vmatmul.bf16.gmra.mxu0 %v2524
  %v2623 = vpop.f32.mrf.mxu0
  %v2624 = vadd.f32 %v2549, %v2623
  %v2625 = vpop.f32.mrf.mxu0
  %v2626 = vadd.f32 %v2549, %v2625
  %2627 = vmatmul.bf16.gmra.mxu0 %v2525
  %v2628 = vpop.f32.mrf.mxu0
  %v2629 = vadd.f32 %v2549, %v2628
  %v2630 = vpop.f32.mrf.mxu0
  %v2631 = vadd.f32 %v2549, %v2630
  %2632 = vmatmul.bf16.gmra.mxu0 %v2526
  %v2633 = vpop.f32.mrf.mxu0
  %v2634 = vadd.f32 %v2549, %v2633
  %v2635 = vpop.f32.mrf.mxu0
  %v2636 = vadd.f32 %v2549, %v2635
  %2637 = vmatmul.bf16.gmra.mxu0 %v2527
  %v2638 = vpop.f32.mrf.mxu0
  %v2639 = vadd.f32 %v2549, %v2638
  %v2640 = vpop.f32.mrf.mxu0
  %v2641 = vadd.f32 %v2549, %v2640
  %2642 = vmatmul.bf16.gmra.mxu0 %v2528
  %v2643 = vpop.f32.mrf.mxu0
  %v2644 = vadd.f32 %v2549, %v2643
  %v2645 = vpop.f32.mrf.mxu0
  %v2646 = vadd.f32 %v2549, %v2645
  %2647 = vdwg.mxu0
  %vm2648 = vcmp.gt.f32.partialorder %v2609, 0.0
  %vm2649 = vcmp.gt.f32.partialorder %v2611, 0.0
  %vm2650 = vcmp.gt.f32.partialorder %v2614, 0.0
  %vm2651 = vcmp.gt.f32.partialorder %v2616, 0.0
  %vm2652 = vcmp.gt.f32.partialorder %v2619, 0.0
  %vm2653 = vcmp.gt.f32.partialorder %v2621, 0.0
  %vm2654 = vcmp.gt.f32.partialorder %v2624, 0.0
  %vm2655 = vcmp.gt.f32.partialorder %v2626, 0.0
  %vm2656 = vcmp.gt.f32.partialorder %v2629, 0.0
  %vm2657 = vcmp.gt.f32.partialorder %v2631, 0.0
  %vm2658 = vcmp.gt.f32.partialorder %v2634, 0.0
  %vm2659 = vcmp.gt.f32.partialorder %v2636, 0.0
  %vm2660 = vcmp.gt.f32.partialorder %v2639, 0.0
  %vm2661 = vcmp.gt.f32.partialorder %v2641, 0.0
  %vm2662 = vcmp.gt.f32.partialorder %v2644, 0.0
  %vm2663 = vcmp.gt.f32.partialorder %v2646, 0.0
  %v2664 = vmul.f32 %v2609, 0.25
  %v2665 = vmul.f32 %v2611, 0.25
  %v2666 = vmul.f32 %v2614, 0.25
  %v2667 = vmul.f32 %v2616, 0.25
  %v2668 = vmul.f32 %v2619, 0.25
  %v2669 = vmul.f32 %v2621, 0.25
  %v2670 = vmul.f32 %v2624, 0.25
  %v2671 = vmul.f32 %v2626, 0.25
  %v2672 = vmul.f32 %v2629, 0.25
  %v2673 = vmul.f32 %v2631, 0.25
  %v2674 = vmul.f32 %v2634, 0.25
  %v2675 = vmul.f32 %v2636, 0.25
  %v2676 = vmul.f32 %v2639, 0.25
  %v2677 = vmul.f32 %v2641, 0.25
  %v2678 = vmul.f32 %v2644, 0.25
  %v2679 = vmul.f32 %v2646, 0.25
  %v2680 = vsel %vm2648, %v2609, %v2664
  %v2681 = vsel %vm2649, %v2611, %v2665
  %v2682 = vsel %vm2650, %v2614, %v2666
  %v2683 = vsel %vm2651, %v2616, %v2667
  %v2684 = vsel %vm2652, %v2619, %v2668
  %v2685 = vsel %vm2653, %v2621, %v2669
  %v2686 = vsel %vm2654, %v2624, %v2670
  %v2687 = vsel %vm2655, %v2626, %v2671
  %v2688 = vsel %vm2656, %v2629, %v2672
  %v2689 = vsel %vm2657, %v2631, %v2673
  %v2690 = vsel %vm2658, %v2634, %v2674
  %v2691 = vsel %vm2659, %v2636, %v2675
  %v2692 = vsel %vm2660, %v2639, %v2676
  %v2693 = vsel %vm2661, %v2641, %v2677
  %v2694 = vsel %vm2662, %v2644, %v2678
  %v2695 = vsel %vm2663, %v2646, %v2679
  %s2696 = scalar_lea.vmem %s6, 256
  %v2697 = vld [vmem:[%s2696] sm:$0xf]
  %v2698 = vld [vmem:[%s2696 + $0x4] sm:$0xf]
  %v2699 = vld [vmem:[%s2696 + $0x8] sm:$0xf]
  %v2700 = vld [vmem:[%s2696 + $0xc] sm:$0xf]
  %v2701 = vld [vmem:[%s2696 + $0x10] sm:$0xf]
  %v2702 = vld [vmem:[%s2696 + $0x14] sm:$0xf]
  %v2703 = vld [vmem:[%s2696 + $0x18] sm:$0xf]
  %v2704 = vld [vmem:[%s2696 + $0x1c] sm:$0xf]
  %v2705 = vld [vmem:[%s2696 + $0x20] sm:$0xf]
  %v2706 = vld [vmem:[%s2696 + $0x24] sm:$0xf]
  %v2707 = vld [vmem:[%s2696 + $0x28] sm:$0xf]
  %v2708 = vld [vmem:[%s2696 + $0x2c] sm:$0xf]
  %v2709 = vld [vmem:[%s2696 + $0x30] sm:$0xf]
  %v2710 = vld [vmem:[%s2696 + $0x34] sm:$0xf]
  %v2711 = vld [vmem:[%s2696 + $0x38] sm:$0xf]
  %v2712 = vld [vmem:[%s2696 + $0x3c] sm:$0xf]
  %v2729 = vunpack.c.l.b16 %v2697
  %v2730 = vunpack.c.l.b16 %v2698
  %v2731 = vunpack.c.l.b16 %v2699
  %v2732 = vunpack.c.l.b16 %v2700
  %v2733 = vunpack.c.l.b16 %v2701
  %v2734 = vunpack.c.l.b16 %v2702
  %v2735 = vunpack.c.l.b16 %v2703
  %v2736 = vunpack.c.l.b16 %v2704
  %v2737 = vunpack.c.l.b16 %v2705
  %v2738 = vunpack.c.l.b16 %v2706
  %v2739 = vunpack.c.l.b16 %v2707
  %v2740 = vunpack.c.l.b16 %v2708
  %v2741 = vunpack.c.l.b16 %v2709
  %v2742 = vunpack.c.l.b16 %v2710
  %v2743 = vunpack.c.l.b16 %v2711
  %v2744 = vunpack.c.l.b16 %v2712
  %v2745 = vpack.c.b16 %v2730, %v2729
  %v2746 = vpack.c.b16 %v2732, %v2731
  %v2747 = vpack.c.b16 %v2734, %v2733
  %v2748 = vpack.c.b16 %v2736, %v2735
  %v2749 = vpack.c.b16 %v2738, %v2737
  %v2750 = vpack.c.b16 %v2740, %v2739
  %v2751 = vpack.c.b16 %v2742, %v2741
  %v2752 = vpack.c.b16 %v2744, %v2743
  %2761 = vmatpush.bf16.msra.mxu0 %v2752
  %2762 = vmatpush.bf16.msra.mxu0 %v2751
  %2763 = vmatpush.bf16.msra.mxu0 %v2750
  %2764 = vmatpush.bf16.msra.mxu0 %v2749
  %2765 = vmatpush.bf16.msra.mxu0 %v2748
  %2766 = vmatpush.bf16.msra.mxu0 %v2747
  %2767 = vmatpush.bf16.msra.mxu0 %v2746
  %2768 = vmatpush.bf16.msra.mxu0 %v2745
  %2769 = vmatmul.bf16.gmra.mxu0 %v2289
  %v2770 = vpop.f32.mrf.mxu0
  %v2771 = vadd.f32 0.0, %v2770
  %v2772 = vpop.f32.mrf.mxu0
  %v2773 = vadd.f32 0.0, %v2772
  %2774 = vmatmul.bf16.gmra.mxu0 %v2290
  %v2775 = vpop.f32.mrf.mxu0
  %v2776 = vadd.f32 0.0, %v2775
  %v2777 = vpop.f32.mrf.mxu0
  %v2778 = vadd.f32 0.0, %v2777
  %2779 = vmatmul.bf16.gmra.mxu0 %v2291
  %v2780 = vpop.f32.mrf.mxu0
  %v2781 = vadd.f32 0.0, %v2780
  %v2782 = vpop.f32.mrf.mxu0
  %v2783 = vadd.f32 0.0, %v2782
  %2784 = vmatmul.bf16.gmra.mxu0 %v2292
  %v2785 = vpop.f32.mrf.mxu0
  %v2786 = vadd.f32 0.0, %v2785
  %v2787 = vpop.f32.mrf.mxu0
  %v2788 = vadd.f32 0.0, %v2787
  %2789 = vmatmul.bf16.gmra.mxu0 %v2293
  %v2790 = vpop.f32.mrf.mxu0
  %v2791 = vadd.f32 0.0, %v2790
  %v2792 = vpop.f32.mrf.mxu0
  %v2793 = vadd.f32 0.0, %v2792
  %2794 = vmatmul.bf16.gmra.mxu0 %v2294
  %v2795 = vpop.f32.mrf.mxu0
  %v2796 = vadd.f32 0.0, %v2795
  %v2797 = vpop.f32.mrf.mxu0
  %v2798 = vadd.f32 0.0, %v2797
  %2799 = vmatmul.bf16.gmra.mxu0 %v2295
  %v2800 = vpop.f32.mrf.mxu0
  %v2801 = vadd.f32 0.0, %v2800
  %v2802 = vpop.f32.mrf.mxu0
  %v2803 = vadd.f32 0.0, %v2802
  %2804 = vmatmul.bf16.gmra.mxu0 %v2296
  %v2805 = vpop.f32.mrf.mxu0
  %v2806 = vadd.f32 0.0, %v2805
  %v2807 = vpop.f32.mrf.mxu0
  %v2808 = vadd.f32 0.0, %v2807
  %2809 = vdwg.mxu0
  %v2810 = vadd.f32 %v2680, %v2771
  %v2811 = vadd.f32 %v2681, %v2773
  %v2812 = vadd.f32 %v2682, %v2776
  %v2813 = vadd.f32 %v2683, %v2778
  %v2814 = vadd.f32 %v2684, %v2781
  %v2815 = vadd.f32 %v2685, %v2783
  %v2816 = vadd.f32 %v2686, %v2786
  %v2817 = vadd.f32 %v2687, %v2788
  %v2818 = vadd.f32 %v2688, %v2791
  %v2819 = vadd.f32 %v2689, %v2793
  %v2820 = vadd.f32 %v2690, %v2796
  %v2821 = vadd.f32 %v2691, %v2798
  %v2822 = vadd.f32 %v2692, %v2801
  %v2823 = vadd.f32 %v2693, %v2803
  %v2824 = vadd.f32 %v2694, %v2806
  %v2825 = vadd.f32 %v2695, %v2808
  %2826 = vst [vmem:[%s7] sm:$0xff] %v2810
  %2827 = vst [vmem:[%s7 + $0x8] sm:$0xff] %v2811
  %2828 = vst [vmem:[%s7 + $0x10] sm:$0xff] %v2812
  %2829 = vst [vmem:[%s7 + $0x18] sm:$0xff] %v2813
  %2830 = vst [vmem:[%s7 + $0x20] sm:$0xff] %v2814
  %2831 = vst [vmem:[%s7 + $0x28] sm:$0xff] %v2815
  %2832 = vst [vmem:[%s7 + $0x30] sm:$0xff] %v2816
  %2833 = vst [vmem:[%s7 + $0x38] sm:$0xff] %v2817
  %2834 = vst [vmem:[%s7 + $0x40] sm:$0xff] %v2818
  %2835 = vst [vmem:[%s7 + $0x48] sm:$0xff] %v2819
  %2836 = vst [vmem:[%s7 + $0x50] sm:$0xff] %v2820
  %2837 = vst [vmem:[%s7 + $0x58] sm:$0xff] %v2821
  %2838 = vst [vmem:[%s7 + $0x60] sm:$0xff] %v2822
  %2839 = vst [vmem:[%s7 + $0x68] sm:$0xff] %v2823
  %2840 = vst [vmem:[%s7 + $0x70] sm:$0xff] %v2824
  %2841 = vst [vmem:[%s7 + $0x78] sm:$0xff] %v2825
  // Predicated region
  $region30: #{forward.1} parent=0 // pred_check
    _
  $region31: #{forward.1} parent=0 // pred_check_branch
    %2843 = sbr.rel (0) target = $region33
  $region32: #{forward.1} parent=0 // pred_region
    _
  $region33: #{forward.1} parent=0 // pred_fallthru
    _
  // Predicated region
  $region34: #{forward.1} parent=0 // pred_check
    _
  $region35: #{forward.1} parent=0 // pred_check_branch
    %2845 = sbr.rel (0) target = $region37
  $region36: #{forward.1} parent=0 // pred_region
    _
  $region37: #{forward.1} parent=0 // pred_fallthru
    _

</llo_original>
